<compile_context>
chip_gen: v6e
topology: v6e:2x2x1
jax: 0.10.0
libtpu: 0.0.40
codegen_flags: <defaults>
</compile_context>

<pallas_src>
import jax
import jax.numpy as jnp
from jax.experimental import pallas as pl
from jax.experimental.pallas import tpu as pltpu
from functools import partial


def _mha_kernel(q_ref, k_ref, v_ref,
                wq_ref, bq_ref, wk_ref, bk_ref, wv_ref, bv_ref,
                wo_ref, bo_ref,
                out_ref, attn_ref,
                *, num_heads, head_dim, approx_recip):
    H, D = num_heads, head_dim
    f32 = jnp.float32
    cd = q_ref.dtype                 # MXU operand dtype (f32 or bf16), set by the wrapper
    tq = q_ref.shape[1]              # query tile length
    skv = k_ref.shape[1]             # full key/value sequence length

    xq = q_ref[0]                    # (tq, E)
    xk = k_ref[0]                    # (skv, E)
    xv = v_ref[0]                    # (skv, E)

    # Linear projections: MXU matmuls with f32 accumulation; biases stay f32.
    Q = jnp.dot(xq, wq_ref[...], preferred_element_type=f32) + bq_ref[...]
    K = jnp.dot(xk, wk_ref[...], preferred_element_type=f32) + bk_ref[...]
    V = jnp.dot(xv, wv_ref[...], preferred_element_type=f32) + bv_ref[...]

    # Fold the 1/sqrt(D) score scale into Q once (tq*D elements, not H*tq*skv).
    Q = Q * (1.0 / jnp.sqrt(f32(D)))

    # Head-batched layout (H, S, D): one relayout per tile instead of per-head lane
    # slicing / transpose / concatenate.
    Qh = Q.astype(cd).reshape(tq, H, D).transpose(1, 0, 2)     # (H, tq, D)
    Kh = K.astype(cd).reshape(skv, H, D).transpose(1, 0, 2)    # (H, skv, D)
    Vh = V.astype(cd).reshape(skv, H, D).transpose(1, 0, 2)    # (H, skv, D)

    # All heads' scores in one batched MXU matmul.
    scores = jnp.einsum('hqd,hkd->hqk', Qh, Kh,
                        preferred_element_type=f32)            # (H, tq, skv) f32

    # Softmax kept fully in f32 (v5e: no bf16 VPU/EUP); normalization as a multiply by
    # the (EUP) reciprocal of the row sum instead of a full-width divide.
    m = jnp.max(scores, axis=-1, keepdims=True)
    p = jnp.exp(scores - m)
    denom = jnp.sum(p, axis=-1, keepdims=True)
    p = p * pl.reciprocal(denom, approx=approx_recip)          # (H, tq, skv) f32

    # Single slab store of all heads' attention weights (lane-dense when skv >= 128).
    attn_ref[0] = p.astype(attn_ref.dtype)

    # Batched PV matmul, then back to (tq, E) for the output projection.
    ctx = jnp.einsum('hqk,hkd->hqd', p.astype(cd), Vh,
                     preferred_element_type=f32)               # (H, tq, D) f32
    ctx = ctx.transpose(1, 0, 2).reshape(tq, H * D)            # (tq, E)

    out = jnp.dot(ctx.astype(cd), wo_ref[...], preferred_element_type=f32) + bo_ref[...]
    out_ref[0] = out.astype(out_ref.dtype)


def _pick_tile_q(s):
    """Pick a query tile: full sequence when small, else the largest 128-ish divisor."""
    if s <= 512:
        return s
    for t in (512, 256, 128, 64, 32, 16, 8):
        if s % t == 0:
            return t
    return s


def multi_head_attention(query, key, value, params, *, num_heads,
                         compute_dtype=jnp.float32, tile_q=None, approx_recip=None):
    """query: (B, Sq, E); key/value: (B, Skv, E); params: dict of weights/biases.

    compute_dtype: dtype of MXU operands (activations / weights / probabilities).
      jnp.bfloat16 is recommended on v6e/v7x; accumulation and softmax stay in f32.
    """
    B, Sq, E = query.shape
    Bk, Skv, Ek = key.shape
    assert key.shape == value.shape and Bk == B and Ek == E
    assert E % num_heads == 0
    head_dim = E // num_heads

    if tile_q is None:
        tile_q = _pick_tile_q(Sq)
    assert Sq % tile_q == 0 and (tile_q == Sq or tile_q % 8 == 0)
    if approx_recip is None:
        # EUP approximate reciprocal for the fast (bf16) path; exact for the strict f32 path.
        approx_recip = (compute_dtype != jnp.float32)

    cd = compute_dtype
    q_c, k_c, v_c = (x.astype(cd) for x in (query, key, value))
    wq, wk, wv, wo = (params[n].astype(cd) for n in ("wq", "wk", "wv", "wo"))
    bq, bk, bv, bo = (params[n].astype(jnp.float32) for n in ("bq", "bk", "bv", "bo"))

    grid = (B, Sq // tile_q)

    q_spec = pl.BlockSpec((1, tile_q, E), lambda b, qi: (b, qi, 0))
    kv_spec = pl.BlockSpec((1, Skv, E), lambda b, qi: (b, 0, 0))
    # NOTE(v7x): these weight blocks are grid-invariant; with tight VMEM (64 MiB/TC) they
    # can be single-buffered via pipeline_mode=pl.Buffered(1) to save one copy each.
    w_spec = pl.BlockSpec((E, E), lambda b, qi: (0, 0))
    b_spec = pl.BlockSpec((1, E), lambda b, qi: (0, 0))

    kernel = partial(_mha_kernel, num_heads=num_heads, head_dim=head_dim,
                     approx_recip=approx_recip)

    out, attn = pl.pallas_call(
        kernel,
        out_shape=(
            jax.ShapeDtypeStruct((B, Sq, E), query.dtype),
            # NOTE: if the caller does not need attn_weights, dropping this output is the
            # single biggest bandwidth win; kept to match the PyTorch forward signature.
            jax.ShapeDtypeStruct((B, num_heads, Sq, Skv), jnp.float32),
        ),
        grid_spec=pltpu.PrefetchScalarGridSpec(
            num_scalar_prefetch=0,
            grid=grid,
            in_specs=[
                q_spec, kv_spec, kv_spec,          # query, key, value
                w_spec, b_spec,                    # wq, bq
                w_spec, b_spec,                    # wk, bk
                w_spec, b_spec,                    # wv, bv
                w_spec, b_spec,                    # wo, bo
            ],
            out_specs=(
                pl.BlockSpec((1, tile_q, E), lambda b, qi: (b, qi, 0)),
                pl.BlockSpec((1, num_heads, tile_q, Skv), lambda b, qi: (b, 0, qi, 0)),
            ),
        ),
        compiler_params=pltpu.CompilerParams(
            # Both grid axes are independent -> shard across TensorCores on v7x megacore.
            dimension_semantics=("parallel", "parallel"),
            # Explicit scoped-VMEM cap that fits v7x's 64 MiB physical VMEM with headroom
            # (and is well within v5e/v6e's 128 MiB).
            vmem_limit_bytes=48 * 1024 * 1024,
        ),
    )(q_c, k_c, v_c, wq, bq, wk, bk, wv, bv, wo, bo)
    return out, attn


def init_params(key, embed_dim):
    """Deterministic init mimicking nn.Linear default (uniform ±1/sqrt(fan_in)).
    Weights are stored pre-transposed to (E_in, E_out); biases as (1, E)."""
    bound = 1.0 / jnp.sqrt(jnp.float32(embed_dim))
    ks = jax.random.split(key, 8)

    def u(k, shape):
        return jax.random.uniform(k, shape, jnp.float32, -bound, bound)

    return dict(
        wq=u(ks[0], (embed_dim, embed_dim)), bq=u(ks[1], (1, embed_dim)),
        wk=u(ks[2], (embed_dim, embed_dim)), bk=u(ks[3], (1, embed_dim)),
        wv=u(ks[4], (embed_dim, embed_dim)), bv=u(ks[5], (1, embed_dim)),
        wo=u(ks[6], (embed_dim, embed_dim)), bo=u(ks[7], (1, embed_dim)),
    )


def mha_reference(query, key, value, params, *, num_heads):
    """Pure-JAX reference matching the PyTorch forward (mask=None)."""
    B, S, E = query.shape
    D = E // num_heads

    def lin(x, w, b):
        return x @ w + b  # w already (E_in, E_out)

    Q = lin(query, params["wq"], params["bq"]).reshape(B, S, num_heads, D).transpose(0, 2, 1, 3)
    K = lin(key, params["wk"], params["bk"]).reshape(B, key.shape[1], num_heads, D).transpose(0, 2, 1, 3)
    V = lin(value, params["wv"], params["bv"]).reshape(B, value.shape[1], num_heads, D).transpose(0, 2, 1, 3)
    scores = jnp.einsum("bhqd,bhkd->bhqk", Q, K) / jnp.sqrt(jnp.float32(D))
    attn = jax.nn.softmax(scores, axis=-1)
    ctx = jnp.einsum("bhqk,bhkd->bhqd", attn, V).transpose(0, 2, 1, 3).reshape(B, S, E)
    out = ctx @ params["wo"] + params["bo"]
    return out, attn


if __name__ == "__main__":
    B, S, E, H = 2, 8, 32, 4

    root = jax.random.PRNGKey(0)
    k_q, k_k, k_v, k_p = jax.random.split(root, 4)
    query = jax.random.normal(k_q, (B, S, E), jnp.float32)
    key = jax.random.normal(k_k, (B, S, E), jnp.float32)
    value = jax.random.normal(k_v, (B, S, E), jnp.float32)
    params = init_params(k_p, E)

    ref_out, ref_attn = mha_reference(query, key, value, params, num_heads=H)

    # Strict f32 path.
    out, attn = multi_head_attention(query, key, value, params, num_heads=H)
    jax.block_until_ready((out, attn))
    assert jnp.allclose(out, ref_out, atol=1e-4, rtol=1e-4), "f32 output mismatch"
    assert jnp.allclose(attn, ref_attn, atol=1e-4, rtol=1e-4), "f32 attn_weights mismatch"

    # bf16 MXU-operand path (recommended on v6e/v7x); softmax & accumulation stay f32.
    out_bf, attn_bf = multi_head_attention(query, key, value, params, num_heads=H,
                                           compute_dtype=jnp.bfloat16)
    jax.block_until_ready((out_bf, attn_bf))
    assert jnp.allclose(out_bf, ref_out, atol=5e-2, rtol=5e-2), "bf16 output mismatch"
    assert jnp.allclose(attn_bf, ref_attn, atol=5e-2, rtol=5e-2), "bf16 attn_weights mismatch"

    print("KERNEL_OK")
</pallas_src>

<mosaic_0001>
module attributes {stable_mosaic.version = 11 : i64} {
  func.func @_mha_kernel(%arg0: i32, %arg1: i32, %arg2: memref<1x8x32xf32, #tpu.memory_space<vmem>>, %arg3: memref<1x8x32xf32, #tpu.memory_space<vmem>>, %arg4: memref<1x8x32xf32, #tpu.memory_space<vmem>>, %arg5: memref<32x32xf32, #tpu.memory_space<vmem>>, %arg6: memref<1x32xf32, #tpu.memory_space<vmem>>, %arg7: memref<32x32xf32, #tpu.memory_space<vmem>>, %arg8: memref<1x32xf32, #tpu.memory_space<vmem>>, %arg9: memref<32x32xf32, #tpu.memory_space<vmem>>, %arg10: memref<1x32xf32, #tpu.memory_space<vmem>>, %arg11: memref<32x32xf32, #tpu.memory_space<vmem>>, %arg12: memref<1x32xf32, #tpu.memory_space<vmem>>, %arg13: memref<1x8x32xf32, #tpu.memory_space<vmem>>, %arg14: memref<1x4x8x8xf32, #tpu.memory_space<vmem>>) attributes {dimension_semantics = [#tpu.dimension_semantics<parallel>, #tpu.dimension_semantics<parallel>], iteration_bounds = array<i64: 2, 1>, scalar_prefetch = 0 : i64, scratch_operands = 0 : i64, tpu.core_type = #tpu.core_type<tc>, window_params = [{transform_indices = @transform_0, window_bounds = array<i64: 1, 8, 32>}, {transform_indices = @transform_1, window_bounds = array<i64: 1, 8, 32>}, {transform_indices = @transform_2, window_bounds = array<i64: 1, 8, 32>}, {pipeline_mode = #tpu.pipeline_mode<synchronous>, transform_indices = @transform_3, window_bounds = array<i64: 32, 32>}, {pipeline_mode = #tpu.pipeline_mode<synchronous>, transform_indices = @transform_4, window_bounds = array<i64: 1, 32>}, {pipeline_mode = #tpu.pipeline_mode<synchronous>, transform_indices = @transform_5, window_bounds = array<i64: 32, 32>}, {pipeline_mode = #tpu.pipeline_mode<synchronous>, transform_indices = @transform_6, window_bounds = array<i64: 1, 32>}, {pipeline_mode = #tpu.pipeline_mode<synchronous>, transform_indices = @transform_7, window_bounds = array<i64: 32, 32>}, {pipeline_mode = #tpu.pipeline_mode<synchronous>, transform_indices = @transform_8, window_bounds = array<i64: 1, 32>}, {pipeline_mode = #tpu.pipeline_mode<synchronous>, transform_indices = @transform_9, window_bounds = array<i64: 32, 32>}, {pipeline_mode = #tpu.pipeline_mode<synchronous>, transform_indices = @transform_10, window_bounds = array<i64: 1, 32>}, {transform_indices = @transform_11, window_bounds = array<i64: 1, 8, 32>}, {transform_indices = @transform_12, window_bounds = array<i64: 1, 4, 8, 8>}]} {
    %c0 = arith.constant 0 : index
    %c0_0 = arith.constant 0 : index
    %c0_1 = arith.constant 0 : index
    %0 = vector.load %arg2[%c0, %c0_0, %c0_1] : memref<1x8x32xf32, #tpu.memory_space<vmem>>, vector<1x8x32xf32>
    %1 = vector.shape_cast %0 : vector<1x8x32xf32> to vector<8x32xf32>
    %c0_2 = arith.constant 0 : index
    %c0_3 = arith.constant 0 : index
    %c0_4 = arith.constant 0 : index
    %2 = vector.load %arg3[%c0_2, %c0_3, %c0_4] : memref<1x8x32xf32, #tpu.memory_space<vmem>>, vector<1x8x32xf32>
    %3 = vector.shape_cast %2 : vector<1x8x32xf32> to vector<8x32xf32>
    %c0_5 = arith.constant 0 : index
    %c0_6 = arith.constant 0 : index
    %c0_7 = arith.constant 0 : index
    %4 = vector.load %arg4[%c0_5, %c0_6, %c0_7] : memref<1x8x32xf32, #tpu.memory_space<vmem>>, vector<1x8x32xf32>
    %5 = vector.shape_cast %4 : vector<1x8x32xf32> to vector<8x32xf32>
    %c0_8 = arith.constant 0 : index
    %c0_9 = arith.constant 0 : index
    %6 = vector.load %arg5[%c0_8, %c0_9] : memref<32x32xf32, #tpu.memory_space<vmem>>, vector<32x32xf32>
    %cst = arith.constant dense<0.000000e+00> : vector<8x32xf32>
    %7 = tpu.matmul %1, %6, %cst {dimension_numbers = #tpu.dot_dimension_numbers<[1], [0], [0], [1], [0, 0, 1, 1], [], []>} : vector<8x32xf32>, vector<32x32xf32>, vector<8x32xf32> -> vector<8x32xf32>
    %c0_10 = arith.constant 0 : index
    %c0_11 = arith.constant 0 : index
    %8 = vector.load %arg6[%c0_10, %c0_11] : memref<1x32xf32, #tpu.memory_space<vmem>>, vector<1x32xf32>
    %9 = vector.broadcast %8 : vector<1x32xf32> to vector<8x32xf32>
    %10 = arith.addf %7, %9 : vector<8x32xf32>
    %c0_12 = arith.constant 0 : index
    %c0_13 = arith.constant 0 : index
    %11 = vector.load %arg7[%c0_12, %c0_13] : memref<32x32xf32, #tpu.memory_space<vmem>>, vector<32x32xf32>
    %cst_14 = arith.constant dense<0.000000e+00> : vector<8x32xf32>
    %12 = tpu.matmul %3, %11, %cst_14 {dimension_numbers = #tpu.dot_dimension_numbers<[1], [0], [0], [1], [0, 0, 1, 1], [], []>} : vector<8x32xf32>, vector<32x32xf32>, vector<8x32xf32> -> vector<8x32xf32>
    %c0_15 = arith.constant 0 : index
    %c0_16 = arith.constant 0 : index
    %13 = vector.load %arg8[%c0_15, %c0_16] : memref<1x32xf32, #tpu.memory_space<vmem>>, vector<1x32xf32>
    %14 = vector.broadcast %13 : vector<1x32xf32> to vector<8x32xf32>
    %15 = arith.addf %12, %14 : vector<8x32xf32>
    %c0_17 = arith.constant 0 : index
    %c0_18 = arith.constant 0 : index
    %16 = vector.load %arg9[%c0_17, %c0_18] : memref<32x32xf32, #tpu.memory_space<vmem>>, vector<32x32xf32>
    %cst_19 = arith.constant dense<0.000000e+00> : vector<8x32xf32>
    %17 = tpu.matmul %5, %16, %cst_19 {dimension_numbers = #tpu.dot_dimension_numbers<[1], [0], [0], [1], [0, 0, 1, 1], [], []>} : vector<8x32xf32>, vector<32x32xf32>, vector<8x32xf32> -> vector<8x32xf32>
    %c0_20 = arith.constant 0 : index
    %c0_21 = arith.constant 0 : index
    %18 = vector.load %arg10[%c0_20, %c0_21] : memref<1x32xf32, #tpu.memory_space<vmem>>, vector<1x32xf32>
    %19 = vector.broadcast %18 : vector<1x32xf32> to vector<8x32xf32>
    %20 = arith.addf %17, %19 : vector<8x32xf32>
    %cst_22 = arith.constant 8.000000e+00 : f32
    %21 = math.sqrt %cst_22 : f32
    %cst_23 = arith.constant 1.000000e+00 : f32
    %22 = arith.divf %cst_23, %21 : f32
    %23 = vector.broadcast %22 : f32 to vector<8x32xf32>
    %24 = arith.mulf %10, %23 : vector<8x32xf32>
    %25 = vector.shape_cast %24 : vector<8x32xf32> to vector<8x4x8xf32>
    %26 = tpu.transpose %25, [1, 0, 2] : vector<8x4x8xf32> -> vector<4x8x8xf32>
    %27 = vector.shape_cast %15 : vector<8x32xf32> to vector<8x4x8xf32>
    %28 = tpu.transpose %27, [1, 0, 2] : vector<8x4x8xf32> -> vector<4x8x8xf32>
    %29 = vector.shape_cast %20 : vector<8x32xf32> to vector<8x4x8xf32>
    %30 = tpu.transpose %29, [1, 0, 2] : vector<8x4x8xf32> -> vector<4x8x8xf32>
    "tpu.trace_start"() <{level = 10 : i32, message = "hqd,hkd->hqk"}> : () -> ()
    %cst_24 = arith.constant dense<0.000000e+00> : vector<4x8x8xf32>
    %31 = tpu.matmul %26, %28, %cst_24 {dimension_numbers = #tpu.dot_dimension_numbers<[2], [2], [1], [1], [0, 0, 0, 1, 1, 1], [0], [0]>} : vector<4x8x8xf32>, vector<4x8x8xf32>, vector<4x8x8xf32> -> vector<4x8x8xf32>
    "tpu.trace_stop"() : () -> ()
    %cst_25 = arith.constant dense<0xFF800000> : vector<4x8xf32>
    %32 = vector.multi_reduction <maximumf>, %31, %cst_25 [2] : vector<4x8x8xf32> to vector<4x8xf32>
    %33 = vector.shape_cast %32 : vector<4x8xf32> to vector<4x8x1xf32>
    %34 = vector.broadcast %33 : vector<4x8x1xf32> to vector<4x8x8xf32>
    %35 = arith.subf %31, %34 : vector<4x8x8xf32>
    %36 = math.exp %35 : vector<4x8x8xf32>
    %cst_26 = arith.constant dense<0.000000e+00> : vector<4x8xf32>
    %37 = vector.multi_reduction <add>, %36, %cst_26 [2] : vector<4x8x8xf32> to vector<4x8xf32>
    %38 = vector.shape_cast %37 : vector<4x8xf32> to vector<4x8x1xf32>
    %39 = tpu.reciprocal %38 : vector<4x8x1xf32> -> vector<4x8x1xf32>
    %40 = vector.broadcast %39 : vector<4x8x1xf32> to vector<4x8x8xf32>
    %41 = arith.mulf %36, %40 : vector<4x8x8xf32>
    %c0_27 = arith.constant 0 : index
    %c0_28 = arith.constant 0 : index
    %c0_29 = arith.constant 0 : index
    %c0_30 = arith.constant 0 : index
    %42 = vector.load %arg14[%c0_27, %c0_28, %c0_29, %c0_30] : memref<1x4x8x8xf32, #tpu.memory_space<vmem>>, vector<1x4x8x8xf32>
    %43 = vector.shape_cast %42 : vector<1x4x8x8xf32> to vector<4x8x8xf32>
    %44 = vector.shape_cast %41 : vector<4x8x8xf32> to vector<1x4x8x8xf32>
    tpu.vector_store %arg14[%c0_27, %c0_28, %c0_29, %c0_30], %44 {strides = array<i32>} : memref<1x4x8x8xf32, #tpu.memory_space<vmem>>, vector<1x4x8x8xf32>,
    "tpu.trace_start"() <{level = 10 : i32, message = "hqk,hkd->hqd"}> : () -> ()
    %cst_31 = arith.constant dense<0.000000e+00> : vector<4x8x8xf32>
    %45 = tpu.matmul %41, %30, %cst_31 {dimension_numbers = #tpu.dot_dimension_numbers<[2], [1], [1], [2], [0, 0, 0, 1, 1, 2], [0], [0]>} : vector<4x8x8xf32>, vector<4x8x8xf32>, vector<4x8x8xf32> -> vector<4x8x8xf32>
    "tpu.trace_stop"() : () -> ()
    %46 = tpu.transpose %45, [1, 0, 2] : vector<4x8x8xf32> -> vector<8x4x8xf32>
    %47 = vector.shape_cast %46 : vector<8x4x8xf32> to vector<8x32xf32>
    %c0_32 = arith.constant 0 : index
    %c0_33 = arith.constant 0 : index
    %48 = vector.load %arg11[%c0_32, %c0_33] : memref<32x32xf32, #tpu.memory_space<vmem>>, vector<32x32xf32>
    %cst_34 = arith.constant dense<0.000000e+00> : vector<8x32xf32>
    %49 = tpu.matmul %47, %48, %cst_34 {dimension_numbers = #tpu.dot_dimension_numbers<[1], [0], [0], [1], [0, 0, 1, 1], [], []>} : vector<8x32xf32>, vector<32x32xf32>, vector<8x32xf32> -> vector<8x32xf32>
    %c0_35 = arith.constant 0 : index
    %c0_36 = arith.constant 0 : index
    %50 = vector.load %arg12[%c0_35, %c0_36] : memref<1x32xf32, #tpu.memory_space<vmem>>, vector<1x32xf32>
    %51 = vector.broadcast %50 : vector<1x32xf32> to vector<8x32xf32>
    %52 = arith.addf %49, %51 : vector<8x32xf32>
    %c0_37 = arith.constant 0 : index
    %c0_38 = arith.constant 0 : index
    %c0_39 = arith.constant 0 : index
    %53 = vector.load %arg13[%c0_37, %c0_38, %c0_39] : memref<1x8x32xf32, #tpu.memory_space<vmem>>, vector<1x8x32xf32>
    %54 = vector.shape_cast %53 : vector<1x8x32xf32> to vector<8x32xf32>
    %55 = vector.shape_cast %52 : vector<8x32xf32> to vector<1x8x32xf32>
    tpu.vector_store %arg13[%c0_37, %c0_38, %c0_39], %55 {strides = array<i32>} : memref<1x8x32xf32, #tpu.memory_space<vmem>>, vector<1x8x32xf32>,
    return
  }
  func.func @transform_0(%arg0: i32, %arg1: i32) -> (i32, i32, i32) {
    %c0_i32 = arith.constant 0 : i32
    %c0_i32_0 = arith.constant 0 : i32
    return %arg0, %arg1, %c0_i32 : i32, i32, i32
  }
  func.func @transform_1(%arg0: i32, %arg1: i32) -> (i32, i32, i32) {
    %c0_i32 = arith.constant 0 : i32
    %c0_i32_0 = arith.constant 0 : i32
    %c0_i32_1 = arith.constant 0 : i32
    return %arg0, %c0_i32, %c0_i32_0 : i32, i32, i32
  }
  func.func @transform_2(%arg0: i32, %arg1: i32) -> (i32, i32, i32) {
    %c0_i32 = arith.constant 0 : i32
    %c0_i32_0 = arith.constant 0 : i32
    %c0_i32_1 = arith.constant 0 : i32
    return %arg0, %c0_i32, %c0_i32_0 : i32, i32, i32
  }
  func.func @transform_3(%arg0: i32, %arg1: i32) -> (i32, i32) {
    %c0_i32 = arith.constant 0 : i32
    %c0_i32_0 = arith.constant 0 : i32
    %c0_i32_1 = arith.constant 0 : i32
    return %c0_i32, %c0_i32_0 : i32, i32
  }
  func.func @transform_4(%arg0: i32, %arg1: i32) -> (i32, i32) {
    %c0_i32 = arith.constant 0 : i32
    %c0_i32_0 = arith.constant 0 : i32
    %c0_i32_1 = arith.constant 0 : i32
    return %c0_i32, %c0_i32_0 : i32, i32
  }
  func.func @transform_5(%arg0: i32, %arg1: i32) -> (i32, i32) {
    %c0_i32 = arith.constant 0 : i32
    %c0_i32_0 = arith.constant 0 : i32
    %c0_i32_1 = arith.constant 0 : i32
    return %c0_i32, %c0_i32_0 : i32, i32
  }
  func.func @transform_6(%arg0: i32, %arg1: i32) -> (i32, i32) {
    %c0_i32 = arith.constant 0 : i32
    %c0_i32_0 = arith.constant 0 : i32
    %c0_i32_1 = arith.constant 0 : i32
    return %c0_i32, %c0_i32_0 : i32, i32
  }
  func.func @transform_7(%arg0: i32, %arg1: i32) -> (i32, i32) {
    %c0_i32 = arith.constant 0 : i32
    %c0_i32_0 = arith.constant 0 : i32
    %c0_i32_1 = arith.constant 0 : i32
    return %c0_i32, %c0_i32_0 : i32, i32
  }
  func.func @transform_8(%arg0: i32, %arg1: i32) -> (i32, i32) {
    %c0_i32 = arith.constant 0 : i32
    %c0_i32_0 = arith.constant 0 : i32
    %c0_i32_1 = arith.constant 0 : i32
    return %c0_i32, %c0_i32_0 : i32, i32
  }
  func.func @transform_9(%arg0: i32, %arg1: i32) -> (i32, i32) {
    %c0_i32 = arith.constant 0 : i32
    %c0_i32_0 = arith.constant 0 : i32
    %c0_i32_1 = arith.constant 0 : i32
    return %c0_i32, %c0_i32_0 : i32, i32
  }
  func.func @transform_10(%arg0: i32, %arg1: i32) -> (i32, i32) {
    %c0_i32 = arith.constant 0 : i32
    %c0_i32_0 = arith.constant 0 : i32
    %c0_i32_1 = arith.constant 0 : i32
    return %c0_i32, %c0_i32_0 : i32, i32
  }
  func.func @transform_11(%arg0: i32, %arg1: i32) -> (i32, i32, i32) {
    %c0_i32 = arith.constant 0 : i32
    %c0_i32_0 = arith.constant 0 : i32
    return %arg0, %arg1, %c0_i32 : i32, i32, i32
  }
  func.func @transform_12(%arg0: i32, %arg1: i32) -> (i32, i32, i32, i32) {
    %c0_i32 = arith.constant 0 : i32
    %c0_i32_0 = arith.constant 0 : i32
    %c0_i32_1 = arith.constant 0 : i32
    return %arg0, %c0_i32, %arg1, %c0_i32_0 : i32, i32, i32, i32
  }
}

</mosaic_0001>

<llo_original>
// kernel: tpu_custom_call.1
$region0: #{tpu_custom_call.1}
  #allocation0 [shape = 'u32[]', space=smem, size = 0x4, offset = 0x4, fixed_abs, tag = 'smem constant byte address 0x4 - core index']
  #allocation1 [shape = 'u32[144,128]{1,0:T(1,128)}', space=vmem, size = 0x12000, scoped, tag = 'internal scratch']
  %s0 = inlined_call_operand.hbm [shape: f32[2,8,32], index: 0, kind: input, shape index: {}]
  %s1 = inlined_call_operand.hbm [shape: f32[2,8,32], index: 1, kind: input, shape index: {}]
  %s2 = inlined_call_operand.hbm [shape: f32[2,8,32], index: 2, kind: input, shape index: {}]
  %s3 = inlined_call_operand.hbm [shape: f32[32,32], index: 3, kind: input, shape index: {}]
  %s4 = inlined_call_operand.vmem [shape: f32[1,32], index: 4, kind: input, shape index: {}]
  %s5 = inlined_call_operand.hbm [shape: f32[32,32], index: 5, kind: input, shape index: {}]
  %s6 = inlined_call_operand.vmem [shape: f32[1,32], index: 6, kind: input, shape index: {}]
  %s7 = inlined_call_operand.hbm [shape: f32[32,32], index: 7, kind: input, shape index: {}]
  %s8 = inlined_call_operand.vmem [shape: f32[1,32], index: 8, kind: input, shape index: {}]
  %s9 = inlined_call_operand.hbm [shape: f32[32,32], index: 9, kind: input, shape index: {}]
  %s10 = inlined_call_operand.vmem [shape: f32[1,32], index: 10, kind: input, shape index: {}]
  %s11 = inlined_call_operand.hbm [shape: f32[2,8,32], index: 11, kind: output, shape index: {0}]
  %s12 = inlined_call_operand.hbm [shape: f32[2,4,8,8], index: 12, kind: output, shape index: {1}]
  %13 = xla_tuple %s11, %s12
  %s14 = sld [smem:[#allocation0]]
  $region113: #{tpu_custom_call.1} parent=0
    _
  %s16 = ssub.s32 1, %s14
  %s17 = scalar_select 0, %s16, %s14
  $region1: #{tpu_custom_call.1} parent=0
    #allocation2 [shape = 'u8[8192]{0}', space=vmem, size = 0x2000, scoped, tag = 'input window, operand 0']
    #allocation3 [shape = 's32[2]{0}', space=sflag, size = 0x8, scoped, tag = 'scoped memory for tpu_custom_call.1']
    #allocation4 [shape = 's32[2]{0}', space=sflag, size = 0x8, scoped, tag = 'scoped memory for tpu_custom_call.1']
    #allocation5 [shape = 'u8[8192]{0}', space=vmem, size = 0x2000, scoped, tag = 'input window, operand 1']
    #allocation6 [shape = 's32[2]{0}', space=sflag, size = 0x8, scoped, tag = 'scoped memory for tpu_custom_call.1']
    #allocation7 [shape = 'u8[8192]{0}', space=vmem, size = 0x2000, scoped, tag = 'input window, operand 2']
    #allocation8 [shape = 'u8[16384]{0}', space=vmem, size = 0x4000, scoped, tag = 'input window, operand 3, single buffered']
    #allocation9 [shape = 's32[1]{0}', space=sflag, size = 0x4, scoped, tag = 'scoped memory for tpu_custom_call.1']
    #allocation10 [shape = 'u8[16384]{0}', space=vmem, size = 0x4000, scoped, tag = 'input window, operand 5, single buffered']
    #allocation11 [shape = 'u8[16384]{0}', space=vmem, size = 0x4000, scoped, tag = 'input window, operand 7, single buffered']
    #allocation12 [shape = 's32[1]{0}', space=sflag, size = 0x4, scoped, tag = 'scoped memory for tpu_custom_call.1']
    #allocation13 [shape = 'u8[16384]{0}', space=vmem, size = 0x4000, scoped, tag = 'input window, operand 9, single buffered']
    #allocation14 [shape = 'u8[8192]{0}', space=vmem, size = 0x2000, scoped, tag = 'output window, operand 0']
    #allocation15 [shape = 'u8[32768]{0}', space=vmem, size = 0x8000, scoped, tag = 'output window, operand 1']
    #allocation16 [shape = 's32[2]{0}', space=sflag, size = 0x8, scoped, tag = 'scoped memory for tpu_custom_call.1']
    %18 = vsyncpa [#allocation3], 0
    %s19 = scalar_lea.sflag [#allocation3], 1
    %20 = vsyncpa %s19, 0
    %21 = vsyncpa [#allocation6], 0
    %s22 = scalar_lea.sflag [#allocation6], 1
    %23 = vsyncpa %s22, 0
    %24 = vsyncpa [#allocation9], 0
    %25 = vsyncpa [#allocation12], 0
    %26 = vsyncpa [#allocation4], 0
    %s27 = scalar_lea.sflag [#allocation4], 1
    %28 = vsyncpa %s27, 0
    %29 = vsyncpa [#allocation16], 0
    %s30 = scalar_lea.sflag [#allocation16], 1
    %31 = vsyncpa %s30, 0
    loop: start=0, step=1, limit=4
    $region2: #{tpu_custom_call.1} parent=1 // loop_pre_header
      _
    $region3: #{tpu_custom_call.1} parent=1 // loop_header
      %s33 = sphi 0, %s37
      %p34 = scmp.ge.s32.totalorder %s33, 4
      %s40 = sphi 0, %s52
      %s41 = sphi 0, %s48
      %s42 = sphi 0, %s40
      %s43 = sphi 0, %s41
      %s44 = sphi 0, %s42
      %s45 = sphi 0, %s43
      %s57 = sphi 0, %s59
      %s60 = sphi 0, %s57
      %s61 = sphi 0, %s60
      %s77 = sphi 0, %s61
      %s83 = sphi 0, %s85
      %s86 = sphi 0, %s83
      %s87 = sphi 0, %s86
      %s103 = sphi 0, %s87
      %s109 = sphi 0, %s111
      %s112 = sphi 0, %s109
      %s113 = sphi 0, %s112
      %s129 = sphi 0, %s113
      %s133 = sphi 0, %s133
      %s135 = sphi 0, %s133
      %s136 = sphi 0, %s135
      %s150 = sphi 0, %s136
      %s154 = sphi 0, %s154
      %s156 = sphi 0, %s154
      %s157 = sphi 0, %s156
      %s171 = sphi 0, %s157
      %s175 = sphi 0, %s175
      %s177 = sphi 0, %s175
      %s178 = sphi 0, %s177
      %s192 = sphi 0, %s178
      %s196 = sphi 0, %s196
      %s198 = sphi 0, %s196
      %s199 = sphi 0, %s198
      %s213 = sphi 0, %s199
      %s217 = sphi 0, %s217
      %s219 = sphi 0, %s217
      %s220 = sphi 0, %s219
      %s234 = sphi 0, %s220
      %s238 = sphi 0, %s238
      %s240 = sphi 0, %s238
      %s241 = sphi 0, %s240
      %s255 = sphi 0, %s241
      %s259 = sphi 0, %s259
      %s261 = sphi 0, %s259
      %s262 = sphi 0, %s261
      %s276 = sphi 0, %s262
      %s280 = sphi 0, %s280
      %s282 = sphi 0, %s280
      %s283 = sphi 0, %s282
      %s297 = sphi 0, %s283
      %s305 = sphi 0, %s307
      %s308 = sphi 0, %s305
      %s309 = sphi 0, %s308
      %s325 = sphi 0, %s309
      %s333 = sphi 0, %s335
      %s336 = sphi 0, %s333
      %s337 = sphi 0, %s336
      %s353 = sphi 0, %s337
    $region4: #{tpu_custom_call.1} parent=1 // loop_header_branch
      %36 = sbr.rel (%p34) target = $region8
    $region5: #{tpu_custom_call.1} parent=1 // loop_body
      %s38 = ssub.s32 %s33, 1
      %s39 = ssub.s32 %s33, 2
      %s46 = sadd.s32 1, %s41
      %p47 = scmp.ge.s32.totalorder %s46, 1
      %s48 = scalar_select %p47, 0, %s46
      %s49 = sadd.s32 1, %s40
      %s50 = scalar_select %p47, %s49, %s40
      %p51 = scmp.ge.s32.totalorder %s50, 2
      %s52 = scalar_select %p51, 0, %s50
      %s53 = ssub.s32 %s40, %s52
      %s54 = ssub.s32 %s41, %s48
      %s55 = sor.u32 %s53, %s54
      %p56 = scmp.eq.s32.totalorder %s55, 0
      %s58 = sadd.s32 %s57, 1
      %s59 = scalar_select %p56, %s57, %s58
      %p62 = pneg %p56
      %p63 = scmp.eq.s32.totalorder %s33, 1
      %p64 = por %p62, %p63
      %p65 = scmp.ne.s32.totalorder %s57, %s60
      %p66 = scmp.eq.s32.totalorder %s33, 0
      %p67 = por %p65, %p66
      %p68 = scmp.ne.s32.totalorder %s57, %s60
      %p69 = scmp.eq.s32.totalorder %s38, 1
      %p70 = por %p68, %p69
      %p71 = scmp.ne.s32.totalorder %s60, %s61
      %p72 = scmp.eq.s32.totalorder %s38, 0
      %p73 = por %p71, %p72
      %p74 = scmp.ne.s32.totalorder %s60, %s61
      %p75 = scmp.eq.s32.totalorder %s39, 1
      %p76 = por %p74, %p75
      %p78 = scmp.ne.s32.totalorder %s61, %s77
      %p79 = scmp.eq.s32.totalorder %s39, 0
      %p80 = por %p78, %p79
      %s81 = ssub.s32 %s40, %s52
      %p82 = scmp.eq.s32.totalorder %s81, 0
      %s84 = sadd.s32 %s83, 1
      %s85 = scalar_select %p82, %s83, %s84
      %p88 = pneg %p82
      %p89 = scmp.eq.s32.totalorder %s33, 1
      %p90 = por %p88, %p89
      %p91 = scmp.ne.s32.totalorder %s83, %s86
      %p92 = scmp.eq.s32.totalorder %s33, 0
      %p93 = por %p91, %p92
      %p94 = scmp.ne.s32.totalorder %s83, %s86
      %p95 = scmp.eq.s32.totalorder %s38, 1
      %p96 = por %p94, %p95
      %p97 = scmp.ne.s32.totalorder %s86, %s87
      %p98 = scmp.eq.s32.totalorder %s38, 0
      %p99 = por %p97, %p98
      %p100 = scmp.ne.s32.totalorder %s86, %s87
      %p101 = scmp.eq.s32.totalorder %s39, 1
      %p102 = por %p100, %p101
      %p104 = scmp.ne.s32.totalorder %s87, %s103
      %p105 = scmp.eq.s32.totalorder %s39, 0
      %p106 = por %p104, %p105
      %s107 = ssub.s32 %s40, %s52
      %p108 = scmp.eq.s32.totalorder %s107, 0
      %s110 = sadd.s32 %s109, 1
      %s111 = scalar_select %p108, %s109, %s110
      %p114 = pneg %p108
      %p115 = scmp.eq.s32.totalorder %s33, 1
      %p116 = por %p114, %p115
      %p117 = scmp.ne.s32.totalorder %s109, %s112
      %p118 = scmp.eq.s32.totalorder %s33, 0
      %p119 = por %p117, %p118
      %p120 = scmp.ne.s32.totalorder %s109, %s112
      %p121 = scmp.eq.s32.totalorder %s38, 1
      %p122 = por %p120, %p121
      %p123 = scmp.ne.s32.totalorder %s112, %s113
      %p124 = scmp.eq.s32.totalorder %s38, 0
      %p125 = por %p123, %p124
      %p126 = scmp.ne.s32.totalorder %s112, %s113
      %p127 = scmp.eq.s32.totalorder %s39, 1
      %p128 = por %p126, %p127
      %p130 = scmp.ne.s32.totalorder %s113, %s129
      %p131 = scmp.eq.s32.totalorder %s39, 0
      %p132 = por %p130, %p131
      %s134 = sadd.s32 %s133, 1
      %p137 = scmp.eq.s32.totalorder %s33, 1
      %p138 = scmp.ne.s32.totalorder %s133, %s135
      %p139 = scmp.eq.s32.totalorder %s33, 0
      %p140 = por %p138, %p139
      %p141 = scmp.ne.s32.totalorder %s133, %s135
      %p142 = scmp.eq.s32.totalorder %s38, 1
      %p143 = por %p141, %p142
      %p144 = scmp.ne.s32.totalorder %s135, %s136
      %p145 = scmp.eq.s32.totalorder %s38, 0
      %p146 = por %p144, %p145
      %p147 = scmp.ne.s32.totalorder %s135, %s136
      %p148 = scmp.eq.s32.totalorder %s39, 1
      %p149 = por %p147, %p148
      %p151 = scmp.ne.s32.totalorder %s136, %s150
      %p152 = scmp.eq.s32.totalorder %s39, 0
      %p153 = por %p151, %p152
      %s155 = sadd.s32 %s154, 1
      %p158 = scmp.eq.s32.totalorder %s33, 1
      %p159 = scmp.ne.s32.totalorder %s154, %s156
      %p160 = scmp.eq.s32.totalorder %s33, 0
      %p161 = por %p159, %p160
      %p162 = scmp.ne.s32.totalorder %s154, %s156
      %p163 = scmp.eq.s32.totalorder %s38, 1
      %p164 = por %p162, %p163
      %p165 = scmp.ne.s32.totalorder %s156, %s157
      %p166 = scmp.eq.s32.totalorder %s38, 0
      %p167 = por %p165, %p166
      %p168 = scmp.ne.s32.totalorder %s156, %s157
      %p169 = scmp.eq.s32.totalorder %s39, 1
      %p170 = por %p168, %p169
      %p172 = scmp.ne.s32.totalorder %s157, %s171
      %p173 = scmp.eq.s32.totalorder %s39, 0
      %p174 = por %p172, %p173
      %s176 = sadd.s32 %s175, 1
      %p179 = scmp.eq.s32.totalorder %s33, 1
      %p180 = scmp.ne.s32.totalorder %s175, %s177
      %p181 = scmp.eq.s32.totalorder %s33, 0
      %p182 = por %p180, %p181
      %p183 = scmp.ne.s32.totalorder %s175, %s177
      %p184 = scmp.eq.s32.totalorder %s38, 1
      %p185 = por %p183, %p184
      %p186 = scmp.ne.s32.totalorder %s177, %s178
      %p187 = scmp.eq.s32.totalorder %s38, 0
      %p188 = por %p186, %p187
      %p189 = scmp.ne.s32.totalorder %s177, %s178
      %p190 = scmp.eq.s32.totalorder %s39, 1
      %p191 = por %p189, %p190
      %p193 = scmp.ne.s32.totalorder %s178, %s192
      %p194 = scmp.eq.s32.totalorder %s39, 0
      %p195 = por %p193, %p194
      %s197 = sadd.s32 %s196, 1
      %p200 = scmp.eq.s32.totalorder %s33, 1
      %p201 = scmp.ne.s32.totalorder %s196, %s198
      %p202 = scmp.eq.s32.totalorder %s33, 0
      %p203 = por %p201, %p202
      %p204 = scmp.ne.s32.totalorder %s196, %s198
      %p205 = scmp.eq.s32.totalorder %s38, 1
      %p206 = por %p204, %p205
      %p207 = scmp.ne.s32.totalorder %s198, %s199
      %p208 = scmp.eq.s32.totalorder %s38, 0
      %p209 = por %p207, %p208
      %p210 = scmp.ne.s32.totalorder %s198, %s199
      %p211 = scmp.eq.s32.totalorder %s39, 1
      %p212 = por %p210, %p211
      %p214 = scmp.ne.s32.totalorder %s199, %s213
      %p215 = scmp.eq.s32.totalorder %s39, 0
      %p216 = por %p214, %p215
      %s218 = sadd.s32 %s217, 1
      %p221 = scmp.eq.s32.totalorder %s33, 1
      %p222 = scmp.ne.s32.totalorder %s217, %s219
      %p223 = scmp.eq.s32.totalorder %s33, 0
      %p224 = por %p222, %p223
      %p225 = scmp.ne.s32.totalorder %s217, %s219
      %p226 = scmp.eq.s32.totalorder %s38, 1
      %p227 = por %p225, %p226
      %p228 = scmp.ne.s32.totalorder %s219, %s220
      %p229 = scmp.eq.s32.totalorder %s38, 0
      %p230 = por %p228, %p229
      %p231 = scmp.ne.s32.totalorder %s219, %s220
      %p232 = scmp.eq.s32.totalorder %s39, 1
      %p233 = por %p231, %p232
      %p235 = scmp.ne.s32.totalorder %s220, %s234
      %p236 = scmp.eq.s32.totalorder %s39, 0
      %p237 = por %p235, %p236
      %s239 = sadd.s32 %s238, 1
      %p242 = scmp.eq.s32.totalorder %s33, 1
      %p243 = scmp.ne.s32.totalorder %s238, %s240
      %p244 = scmp.eq.s32.totalorder %s33, 0
      %p245 = por %p243, %p244
      %p246 = scmp.ne.s32.totalorder %s238, %s240
      %p247 = scmp.eq.s32.totalorder %s38, 1
      %p248 = por %p246, %p247
      %p249 = scmp.ne.s32.totalorder %s240, %s241
      %p250 = scmp.eq.s32.totalorder %s38, 0
      %p251 = por %p249, %p250
      %p252 = scmp.ne.s32.totalorder %s240, %s241
      %p253 = scmp.eq.s32.totalorder %s39, 1
      %p254 = por %p252, %p253
      %p256 = scmp.ne.s32.totalorder %s241, %s255
      %p257 = scmp.eq.s32.totalorder %s39, 0
      %p258 = por %p256, %p257
      %s260 = sadd.s32 %s259, 1
      %p263 = scmp.eq.s32.totalorder %s33, 1
      %p264 = scmp.ne.s32.totalorder %s259, %s261
      %p265 = scmp.eq.s32.totalorder %s33, 0
      %p266 = por %p264, %p265
      %p267 = scmp.ne.s32.totalorder %s259, %s261
      %p268 = scmp.eq.s32.totalorder %s38, 1
      %p269 = por %p267, %p268
      %p270 = scmp.ne.s32.totalorder %s261, %s262
      %p271 = scmp.eq.s32.totalorder %s38, 0
      %p272 = por %p270, %p271
      %p273 = scmp.ne.s32.totalorder %s261, %s262
      %p274 = scmp.eq.s32.totalorder %s39, 1
      %p275 = por %p273, %p274
      %p277 = scmp.ne.s32.totalorder %s262, %s276
      %p278 = scmp.eq.s32.totalorder %s39, 0
      %p279 = por %p277, %p278
      %s281 = sadd.s32 %s280, 1
      %p284 = scmp.eq.s32.totalorder %s33, 1
      %p285 = scmp.ne.s32.totalorder %s280, %s282
      %p286 = scmp.eq.s32.totalorder %s33, 0
      %p287 = por %p285, %p286
      %p288 = scmp.ne.s32.totalorder %s280, %s282
      %p289 = scmp.eq.s32.totalorder %s38, 1
      %p290 = por %p288, %p289
      %p291 = scmp.ne.s32.totalorder %s282, %s283
      %p292 = scmp.eq.s32.totalorder %s38, 0
      %p293 = por %p291, %p292
      %p294 = scmp.ne.s32.totalorder %s282, %s283
      %p295 = scmp.eq.s32.totalorder %s39, 1
      %p296 = por %p294, %p295
      %p298 = scmp.ne.s32.totalorder %s283, %s297
      %p299 = scmp.eq.s32.totalorder %s39, 0
      %p300 = por %p298, %p299
      %s301 = ssub.s32 %s40, %s52
      %s302 = ssub.s32 %s41, %s48
      %s303 = sor.u32 %s301, %s302
      %p304 = scmp.eq.s32.totalorder %s303, 0
      %s306 = sadd.s32 %s305, 1
      %s307 = scalar_select %p304, %s305, %s306
      %p310 = pneg %p304
      %p311 = scmp.eq.s32.totalorder %s33, 1
      %p312 = por %p310, %p311
      %p313 = scmp.ne.s32.totalorder %s305, %s308
      %p314 = scmp.eq.s32.totalorder %s33, 0
      %p315 = por %p313, %p314
      %p316 = scmp.ne.s32.totalorder %s305, %s308
      %p317 = scmp.eq.s32.totalorder %s38, 1
      %p318 = por %p316, %p317
      %p319 = scmp.ne.s32.totalorder %s308, %s309
      %p320 = scmp.eq.s32.totalorder %s38, 0
      %p321 = por %p319, %p320
      %p322 = scmp.ne.s32.totalorder %s308, %s309
      %p323 = scmp.eq.s32.totalorder %s39, 1
      %p324 = por %p322, %p323
      %p326 = scmp.ne.s32.totalorder %s309, %s325
      %p327 = scmp.eq.s32.totalorder %s39, 0
      %p328 = por %p326, %p327
      %s329 = ssub.s32 %s40, %s52
      %s330 = ssub.s32 %s41, %s48
      %s331 = sor.u32 %s329, %s330
      %p332 = scmp.eq.s32.totalorder %s331, 0
      %s334 = sadd.s32 %s333, 1
      %s335 = scalar_select %p332, %s333, %s334
      %p338 = pneg %p332
      %p339 = scmp.eq.s32.totalorder %s33, 1
      %p340 = por %p338, %p339
      %p341 = scmp.ne.s32.totalorder %s333, %s336
      %p342 = scmp.eq.s32.totalorder %s33, 0
      %p343 = por %p341, %p342
      %p344 = scmp.ne.s32.totalorder %s333, %s336
      %p345 = scmp.eq.s32.totalorder %s38, 1
      %p346 = por %p344, %p345
      %p347 = scmp.ne.s32.totalorder %s336, %s337
      %p348 = scmp.eq.s32.totalorder %s38, 0
      %p349 = por %p347, %p348
      %p350 = scmp.ne.s32.totalorder %s336, %s337
      %p351 = scmp.eq.s32.totalorder %s39, 1
      %p352 = por %p350, %p351
      %p354 = scmp.ne.s32.totalorder %s337, %s353
      %p355 = scmp.eq.s32.totalorder %s39, 0
      %p356 = por %p354, %p355
      %p357 = scmp.le.s32.totalorder 1, %s33
      %p358 = scmp.lt.s32.totalorder %s33, 3
      %p359 = pnand %p357, %p358
      %p360 = pneg %p359
      // Predicated region
      $region9: #{tpu_custom_call.1} parent=5 // pred_check
        _
      $region10: #{tpu_custom_call.1} parent=5 // pred_check_branch
        %362 = sbr.rel (%p359) target = $region12
      $region11: #{tpu_custom_call.1} parent=5 // pred_region
        %s363 = ssub.s32 %s33, 1
        // Predicated region
        $region13: #{tpu_custom_call.1} parent=11 // pred_check
          %p364 = pneg %p146
        $region14: #{tpu_custom_call.1} parent=11 // pred_check_branch
          %366 = sbr.rel (%p364) target = $region16
        $region15: #{tpu_custom_call.1} parent=11 // pred_region
          %s368 = ssub.s32 512, 512
          %369 = vsyncadd [#allocation9], %s368
          %s370 = sshll.u32 [#allocation8], 4
          %s371 = int_to_ptr.vmem [resolvable:$true] %s370
          %376 = dma.hbm_to_vmem [thread:$0]  %s3, 512, %s371, [#allocation9], 128, 128, 8
        $region16: #{tpu_custom_call.1} parent=11 // pred_fallthru
          _
        // Predicated region
        $region17: #{tpu_custom_call.1} parent=11 // pred_check
          %p377 = pneg %p167
        $region18: #{tpu_custom_call.1} parent=11 // pred_check_branch
          %379 = sbr.rel (%p377) target = $region20
        $region19: #{tpu_custom_call.1} parent=11 // pred_region
          _
        $region20: #{tpu_custom_call.1} parent=11 // pred_fallthru
          _
        // Predicated region
        $region21: #{tpu_custom_call.1} parent=11 // pred_check
          %p380 = pneg %p188
        $region22: #{tpu_custom_call.1} parent=11 // pred_check_branch
          %382 = sbr.rel (%p380) target = $region24
        $region23: #{tpu_custom_call.1} parent=11 // pred_region
          %s384 = ssub.s32 512, 512
          %385 = vsyncadd [#allocation9], %s384
          %s386 = sshll.u32 [#allocation10], 4
          %s387 = int_to_ptr.vmem [resolvable:$true] %s386
          %392 = dma.hbm_to_vmem [thread:$0]  %s5, 512, %s387, [#allocation9], 128, 128, 8
        $region24: #{tpu_custom_call.1} parent=11 // pred_fallthru
          _
        // Predicated region
        $region25: #{tpu_custom_call.1} parent=11 // pred_check
          %p393 = pneg %p209
        $region26: #{tpu_custom_call.1} parent=11 // pred_check_branch
          %395 = sbr.rel (%p393) target = $region28
        $region27: #{tpu_custom_call.1} parent=11 // pred_region
          _
        $region28: #{tpu_custom_call.1} parent=11 // pred_fallthru
          _
        // Predicated region
        $region29: #{tpu_custom_call.1} parent=11 // pred_check
          %p396 = pneg %p230
        $region30: #{tpu_custom_call.1} parent=11 // pred_check_branch
          %398 = sbr.rel (%p396) target = $region32
        $region31: #{tpu_custom_call.1} parent=11 // pred_region
          %s400 = ssub.s32 512, 512
          %401 = vsyncadd [#allocation12], %s400
          %s402 = sshll.u32 [#allocation11], 4
          %s403 = int_to_ptr.vmem [resolvable:$true] %s402
          %408 = dma.hbm_to_vmem [thread:$0]  %s7, 512, %s403, [#allocation12], 128, 128, 8
        $region32: #{tpu_custom_call.1} parent=11 // pred_fallthru
          _
        // Predicated region
        $region33: #{tpu_custom_call.1} parent=11 // pred_check
          %p409 = pneg %p251
        $region34: #{tpu_custom_call.1} parent=11 // pred_check_branch
          %411 = sbr.rel (%p409) target = $region36
        $region35: #{tpu_custom_call.1} parent=11 // pred_region
          _
        $region36: #{tpu_custom_call.1} parent=11 // pred_fallthru
          _
        // Predicated region
        $region37: #{tpu_custom_call.1} parent=11 // pred_check
          %p412 = pneg %p272
        $region38: #{tpu_custom_call.1} parent=11 // pred_check_branch
          %414 = sbr.rel (%p412) target = $region40
        $region39: #{tpu_custom_call.1} parent=11 // pred_region
          %s416 = ssub.s32 512, 512
          %417 = vsyncadd [#allocation12], %s416
          %s418 = sshll.u32 [#allocation13], 4
          %s419 = int_to_ptr.vmem [resolvable:$true] %s418
          %424 = dma.hbm_to_vmem [thread:$0]  %s9, 512, %s419, [#allocation12], 128, 128, 8
        $region40: #{tpu_custom_call.1} parent=11 // pred_fallthru
          _
        // Predicated region
        $region41: #{tpu_custom_call.1} parent=11 // pred_check
          %p425 = pneg %p293
        $region42: #{tpu_custom_call.1} parent=11 // pred_check_branch
          %427 = sbr.rel (%p425) target = $region44
        $region43: #{tpu_custom_call.1} parent=11 // pred_region
          _
        $region44: #{tpu_custom_call.1} parent=11 // pred_fallthru
          _
      $region12: #{tpu_custom_call.1} parent=5 // pred_fallthru
        _
      %p428 = scmp.lt.s32.totalorder %s33, 2
      // Predicated region
      $region45: #{tpu_custom_call.1} parent=5 // pred_check
        %p429 = pneg %p428
      $region46: #{tpu_custom_call.1} parent=5 // pred_check_branch
        %431 = sbr.rel (%p429) target = $region48
      $region47: #{tpu_custom_call.1} parent=5 // pred_region
        // Predicated region
        $region49: #{tpu_custom_call.1} parent=47 // pred_check
          %p432 = pneg %p67
        $region50: #{tpu_custom_call.1} parent=47 // pred_check_branch
          %434 = sbr.rel (%p432) target = $region52
        $region51: #{tpu_custom_call.1} parent=47 // pred_region
          %s435 = sand.u32 %s57, 1
          %s436 = scalar_lea.sflag [#allocation3], %s435
          %s437 = sand.u32 %s57, 1
          %s438 = smul.addr %s437, 8
          %s439 = scalar_lea.vmem [#allocation2], %s438
          %s441 = ssub.s32 128, 128
          %442 = vsyncadd %s436, %s441
          %s443 = sadd.s32 %s41, %s40
          %s444 = smul.addr %s443, 128
          %s445 = scalar_lea.hbm %s0, %s444
          %s447 = sshll.u32 %s439, 4
          %s448 = int_to_ptr.vmem [resolvable:$true] %s447
          %450 = dma.hbm_to_vmem [thread:$0]  %s445, 128, %s448, %s436
        $region52: #{tpu_custom_call.1} parent=47 // pred_fallthru
          _
        // Predicated region
        $region53: #{tpu_custom_call.1} parent=47 // pred_check
          %p451 = pneg %p93
        $region54: #{tpu_custom_call.1} parent=47 // pred_check_branch
          %453 = sbr.rel (%p451) target = $region56
        $region55: #{tpu_custom_call.1} parent=47 // pred_region
          %s454 = sand.u32 %s33, 1
          %s455 = scalar_lea.sflag [#allocation6], %s454
          %s456 = sand.u32 %s83, 1
          %s457 = smul.addr %s456, 8
          %s458 = scalar_lea.vmem [#allocation5], %s457
          %s460 = ssub.s32 128, 128
          %461 = vsyncadd %s455, %s460
          %s462 = smul.addr %s40, 128
          %s463 = scalar_lea.hbm %s1, %s462
          %s465 = sshll.u32 %s458, 4
          %s466 = int_to_ptr.vmem [resolvable:$true] %s465
          %468 = dma.hbm_to_vmem [thread:$0]  %s463, 128, %s466, %s455
        $region56: #{tpu_custom_call.1} parent=47 // pred_fallthru
          _
        // Predicated region
        $region57: #{tpu_custom_call.1} parent=47 // pred_check
          %p469 = pneg %p119
        $region58: #{tpu_custom_call.1} parent=47 // pred_check_branch
          %471 = sbr.rel (%p469) target = $region60
        $region59: #{tpu_custom_call.1} parent=47 // pred_region
          %s472 = sand.u32 %s33, 1
          %s473 = scalar_lea.sflag [#allocation6], %s472
          %s474 = sand.u32 %s109, 1
          %s475 = smul.addr %s474, 8
          %s476 = scalar_lea.vmem [#allocation7], %s475
          %s478 = ssub.s32 128, 128
          %479 = vsyncadd %s473, %s478
          %s480 = smul.addr %s40, 128
          %s481 = scalar_lea.hbm %s2, %s480
          %s483 = sshll.u32 %s476, 4
          %s484 = int_to_ptr.vmem [resolvable:$true] %s483
          %486 = dma.hbm_to_vmem [thread:$0]  %s481, 128, %s484, %s473
        $region60: #{tpu_custom_call.1} parent=47 // pred_fallthru
          _
      $region48: #{tpu_custom_call.1} parent=5 // pred_fallthru
        _
      %p487 = scmp.le.s32.totalorder 1, %s33
      %p488 = scmp.lt.s32.totalorder %s33, 3
      %p489 = pnand %p487, %p488
      %p490 = pneg %p489
      // Predicated region
      $region61: #{tpu_custom_call.1} parent=5 // pred_check
        _
      $region62: #{tpu_custom_call.1} parent=5 // pred_check_branch
        %492 = sbr.rel (%p489) target = $region64
      $region63: #{tpu_custom_call.1} parent=5 // pred_region
        %s493 = ssub.s32 %s33, 1
        %s494 = sand.u32 %s60, 1
        %s495 = scalar_lea.sflag [#allocation3], %s494
        %s496 = sand.u32 %s60, 1
        %s497 = smul.addr %s496, 8
        %s498 = scalar_lea.vmem [#allocation2], %s497
        // Predicated region
        $region65: #{tpu_custom_call.1} parent=63 // pred_check
          %p499 = pneg %p73
        $region66: #{tpu_custom_call.1} parent=63 // pred_check_branch
          %501 = sbr.rel (%p499) target = $region68
        $region67: #{tpu_custom_call.1} parent=63 // pred_region
          %502 = dma.done %s495, 128
        $region68: #{tpu_custom_call.1} parent=63 // pred_fallthru
          _
        %s503 = sand.u32 %s38, 1
        %s504 = scalar_lea.sflag [#allocation6], %s503
        %s505 = sand.u32 %s86, 1
        %s506 = smul.addr %s505, 8
        %s507 = scalar_lea.vmem [#allocation5], %s506
        // Predicated region
        $region69: #{tpu_custom_call.1} parent=63 // pred_check
          %p508 = pneg %p99
        $region70: #{tpu_custom_call.1} parent=63 // pred_check_branch
          %510 = sbr.rel (%p508) target = $region72
        $region71: #{tpu_custom_call.1} parent=63 // pred_region
          %511 = dma.done %s504, 128
        $region72: #{tpu_custom_call.1} parent=63 // pred_fallthru
          _
        %s512 = sand.u32 %s38, 1
        %s513 = scalar_lea.sflag [#allocation6], %s512
        %s514 = sand.u32 %s112, 1
        %s515 = smul.addr %s514, 8
        %s516 = scalar_lea.vmem [#allocation7], %s515
        // Predicated region
        $region73: #{tpu_custom_call.1} parent=63 // pred_check
          %p517 = pneg %p125
        $region74: #{tpu_custom_call.1} parent=63 // pred_check_branch
          %519 = sbr.rel (%p517) target = $region76
        $region75: #{tpu_custom_call.1} parent=63 // pred_region
          %520 = dma.done %s513, 128
        $region76: #{tpu_custom_call.1} parent=63 // pred_fallthru
          _
        // Predicated region
        $region77: #{tpu_custom_call.1} parent=63 // pred_check
          %p521 = pneg %p146
        $region78: #{tpu_custom_call.1} parent=63 // pred_check_branch
          %523 = sbr.rel (%p521) target = $region80
        $region79: #{tpu_custom_call.1} parent=63 // pred_region
          %524 = dma.done [#allocation9], 512
        $region80: #{tpu_custom_call.1} parent=63 // pred_fallthru
          _
        // Predicated region
        $region81: #{tpu_custom_call.1} parent=63 // pred_check
          %p525 = pneg %p188
        $region82: #{tpu_custom_call.1} parent=63 // pred_check_branch
          %527 = sbr.rel (%p525) target = $region84
        $region83: #{tpu_custom_call.1} parent=63 // pred_region
          %528 = dma.done [#allocation9], 512
        $region84: #{tpu_custom_call.1} parent=63 // pred_fallthru
          _
        // Predicated region
        $region85: #{tpu_custom_call.1} parent=63 // pred_check
          %p529 = pneg %p230
        $region86: #{tpu_custom_call.1} parent=63 // pred_check_branch
          %531 = sbr.rel (%p529) target = $region88
        $region87: #{tpu_custom_call.1} parent=63 // pred_region
          %532 = dma.done [#allocation12], 512
        $region88: #{tpu_custom_call.1} parent=63 // pred_fallthru
          _
        // Predicated region
        $region89: #{tpu_custom_call.1} parent=63 // pred_check
          %p533 = pneg %p272
        $region90: #{tpu_custom_call.1} parent=63 // pred_check_branch
          %535 = sbr.rel (%p533) target = $region92
        $region91: #{tpu_custom_call.1} parent=63 // pred_region
          %536 = dma.done [#allocation12], 512
        $region92: #{tpu_custom_call.1} parent=63 // pred_fallthru
          _
        %s537 = sand.u32 %s60, 1
        %s538 = scalar_lea.sflag [#allocation3], %s537
        %s539 = sand.u32 %s60, 1
        %s540 = smul.addr %s539, 8
        %s541 = scalar_lea.vmem [#allocation2], %s540
        %p542 = pneg %p73
        %p543 = pneg %p70
        %s544 = sand.u32 %s38, 1
        %s545 = scalar_lea.sflag [#allocation6], %s544
        %s546 = sand.u32 %s86, 1
        %s547 = smul.addr %s546, 8
        %s548 = scalar_lea.vmem [#allocation5], %s547
        %p549 = pneg %p99
        %p550 = pneg %p96
        %s551 = sand.u32 %s38, 1
        %s552 = scalar_lea.sflag [#allocation6], %s551
        %s553 = sand.u32 %s112, 1
        %s554 = smul.addr %s553, 8
        %s555 = scalar_lea.vmem [#allocation7], %s554
        %p556 = pneg %p125
        %p557 = pneg %p122
        %p558 = pneg %p146
        %p559 = pneg %p143
        %p560 = pneg %p167
        %p561 = pneg %p164
        %p562 = pneg %p188
        %p563 = pneg %p185
        %p564 = pneg %p209
        %p565 = pneg %p206
        %p566 = pneg %p230
        %p567 = pneg %p227
        %p568 = pneg %p251
        %p569 = pneg %p248
        %p570 = pneg %p272
        %p571 = pneg %p269
        %p572 = pneg %p293
        %p573 = pneg %p290
        %p574 = pneg %p321
        %p575 = pneg %p318
        %s576 = sand.u32 %s308, 1
        %s577 = scalar_lea.sflag [#allocation4], %s576
        %s578 = sand.u32 %s308, 1
        %s579 = smul.addr %s578, 8
        %s580 = scalar_lea.vmem [#allocation14], %s579
        %p581 = pneg %p349
        %p582 = pneg %p346
        %s583 = sand.u32 %s336, 1
        %s584 = scalar_lea.sflag [#allocation16], %s583
        %s585 = sand.u32 %s336, 1
        %s586 = smul.addr %s585, 32
        %s587 = scalar_lea.vmem [#allocation15], %s586
        %v588 = vld [vmem:[%s498] sm:$0xff]
        %v589 = vld [vmem:[%s507] sm:$0xff]
        %v590 = vld [vmem:[%s516] sm:$0xff]
        %v591 = vld [vmem:[#allocation8] sm:$0xff]
        %v592 = vld [vmem:[#allocation8 + $0x8] sm:$0xff]
        %v593 = vld [vmem:[#allocation8 + $0x10] sm:$0xff]
        %v594 = vld [vmem:[#allocation8 + $0x18] sm:$0xff]
        %v595 = vld [vmem:[%s4] sm:$0x1]
        %v597 = vlaneseq
        %v598 = vshrl.u32 %v597, 7
        %v599 = vsub.s32 0, %v598
        %v600 = vrot.slane %v595, %v599
        %vm602 = vcmask 261120
        %v604 = vsel %vm602, %v588, 0
        %606 = vmatprep.subr.mxu0 0.0
        %607 = vmatpush1.msra.mxu0 0.0
        %608 = vmatprep.subr.mxu0 0.0
        %609 = vmatpush1.msra.mxu0 0.0
        %610 = vmatprep.subr.mxu0 0.0
        %611 = vmatpush1.msra.mxu0 0.0
        %612 = vmatprep.subr.mxu0 0.0
        %613 = vmatpush1.msra.mxu0 0.0
        %614 = vmatprep.subr.mxu0 0.0
        %615 = vmatpush1.msra.mxu0 0.0
        %616 = vmatprep.subr.mxu0 0.0
        %617 = vmatpush1.msra.mxu0 0.0
        %618 = vmatprep.subr.mxu0 0.0
        %619 = vmatpush1.msra.mxu0 0.0
        %620 = vmatprep.subr.mxu0 0.0
        %621 = vmatpush1.msra.mxu0 0.0
        %622 = vmatprep.subr.mxu0 0.0
        %623 = vmatpush1.msra.mxu0 0.0
        %624 = vmatprep.subr.mxu0 0.0
        %625 = vmatpush1.msra.mxu0 0.0
        %626 = vmatprep.subr.mxu0 0.0
        %627 = vmatpush1.msra.mxu0 0.0
        %628 = vmatprep.subr.mxu0 0.0
        %629 = vmatpush1.msra.mxu0 0.0
        %630 = vmatprep.subr.mxu0 0.0
        %631 = vmatpush1.msra.mxu0 %v594
        %632 = vmatprep.subr.mxu0 0.0
        %633 = vmatpush1.msra.mxu0 %v593
        %634 = vmatprep.subr.mxu0 0.0
        %635 = vmatpush1.msra.mxu0 %v592
        %636 = vmatprep.subr.mxu0 0.0
        %637 = vmatpush1.msra.mxu0 %v591
        %638 = vmatprep.subr.mxu0 0.0
        %639 = vmatpush2.msra.mxu0 0.0
        %640 = vmatprep.subr.mxu0 0.0
        %641 = vmatpush2.msra.mxu0 0.0
        %642 = vmatprep.subr.mxu0 0.0
        %643 = vmatpush2.msra.mxu0 0.0
        %644 = vmatprep.subr.mxu0 0.0
        %645 = vmatpush2.msra.mxu0 0.0
        %646 = vmatprep.subr.mxu0 0.0
        %647 = vmatpush2.msra.mxu0 0.0
        %648 = vmatprep.subr.mxu0 0.0
        %649 = vmatpush2.msra.mxu0 0.0
        %650 = vmatprep.subr.mxu0 0.0
        %651 = vmatpush2.msra.mxu0 0.0
        %652 = vmatprep.subr.mxu0 0.0
        %653 = vmatpush2.msra.mxu0 0.0
        %654 = vmatprep.subr.mxu0 0.0
        %655 = vmatpush2.msra.mxu0 0.0
        %656 = vmatprep.subr.mxu0 0.0
        %657 = vmatpush2.msra.mxu0 0.0
        %658 = vmatprep.subr.mxu0 0.0
        %659 = vmatpush2.msra.mxu0 0.0
        %660 = vmatprep.subr.mxu0 0.0
        %661 = vmatpush2.msra.mxu0 0.0
        %662 = vmatprep.subr.mxu0 0.0
        %663 = vmatpush2.msra.mxu0 0.0
        %664 = vmatprep.subr.mxu0 0.0
        %665 = vmatpush2.msra.mxu0 0.0
        %666 = vmatprep.subr.mxu0 0.0
        %667 = vmatpush2.msra.mxu0 0.0
        %668 = vmatprep.subr.mxu0 0.0
        %669 = vmatpush2.msra.mxu0 0.0
        %670 = vmatprep.mubr.f32.mxu0 0.0
        %671 = vmatmul.mubr.f32.gmra.mxu0 %v604
        %v672 = vpop.f32.mrf.mxu0
        %v673 = vadd.f32 %v600, %v672
        %v674 = vpop.f32.mrf.mxu0
        %675 = vdwg.mxu0
        %v676 = vld [vmem:[#allocation10] sm:$0xff]
        %v677 = vld [vmem:[#allocation10 + $0x8] sm:$0xff]
        %v678 = vld [vmem:[#allocation10 + $0x10] sm:$0xff]
        %v679 = vld [vmem:[#allocation10 + $0x18] sm:$0xff]
        %v680 = vld [vmem:[%s6] sm:$0x1]
        %v682 = vlaneseq
        %v683 = vshrl.u32 %v682, 7
        %v684 = vsub.s32 0, %v683
        %v685 = vrot.slane %v680, %v684
        %v688 = vsel %vm602, %v589, 0
        %690 = vmatprep.subr.mxu0 0.0
        %691 = vmatpush1.msra.mxu0 0.0
        %692 = vmatprep.subr.mxu0 0.0
        %693 = vmatpush1.msra.mxu0 0.0
        %694 = vmatprep.subr.mxu0 0.0
        %695 = vmatpush1.msra.mxu0 0.0
        %696 = vmatprep.subr.mxu0 0.0
        %697 = vmatpush1.msra.mxu0 0.0
        %698 = vmatprep.subr.mxu0 0.0
        %699 = vmatpush1.msra.mxu0 0.0
        %700 = vmatprep.subr.mxu0 0.0
        %701 = vmatpush1.msra.mxu0 0.0
        %702 = vmatprep.subr.mxu0 0.0
        %703 = vmatpush1.msra.mxu0 0.0
        %704 = vmatprep.subr.mxu0 0.0
        %705 = vmatpush1.msra.mxu0 0.0
        %706 = vmatprep.subr.mxu0 0.0
        %707 = vmatpush1.msra.mxu0 0.0
        %708 = vmatprep.subr.mxu0 0.0
        %709 = vmatpush1.msra.mxu0 0.0
        %710 = vmatprep.subr.mxu0 0.0
        %711 = vmatpush1.msra.mxu0 0.0
        %712 = vmatprep.subr.mxu0 0.0
        %713 = vmatpush1.msra.mxu0 0.0
        %714 = vmatprep.subr.mxu0 0.0
        %715 = vmatpush1.msra.mxu0 %v679
        %716 = vmatprep.subr.mxu0 0.0
        %717 = vmatpush1.msra.mxu0 %v678
        %718 = vmatprep.subr.mxu0 0.0
        %719 = vmatpush1.msra.mxu0 %v677
        %720 = vmatprep.subr.mxu0 0.0
        %721 = vmatpush1.msra.mxu0 %v676
        %722 = vmatprep.subr.mxu0 0.0
        %723 = vmatpush2.msra.mxu0 0.0
        %724 = vmatprep.subr.mxu0 0.0
        %725 = vmatpush2.msra.mxu0 0.0
        %726 = vmatprep.subr.mxu0 0.0
        %727 = vmatpush2.msra.mxu0 0.0
        %728 = vmatprep.subr.mxu0 0.0
        %729 = vmatpush2.msra.mxu0 0.0
        %730 = vmatprep.subr.mxu0 0.0
        %731 = vmatpush2.msra.mxu0 0.0
        %732 = vmatprep.subr.mxu0 0.0
        %733 = vmatpush2.msra.mxu0 0.0
        %734 = vmatprep.subr.mxu0 0.0
        %735 = vmatpush2.msra.mxu0 0.0
        %736 = vmatprep.subr.mxu0 0.0
        %737 = vmatpush2.msra.mxu0 0.0
        %738 = vmatprep.subr.mxu0 0.0
        %739 = vmatpush2.msra.mxu0 0.0
        %740 = vmatprep.subr.mxu0 0.0
        %741 = vmatpush2.msra.mxu0 0.0
        %742 = vmatprep.subr.mxu0 0.0
        %743 = vmatpush2.msra.mxu0 0.0
        %744 = vmatprep.subr.mxu0 0.0
        %745 = vmatpush2.msra.mxu0 0.0
        %746 = vmatprep.subr.mxu0 0.0
        %747 = vmatpush2.msra.mxu0 0.0
        %748 = vmatprep.subr.mxu0 0.0
        %749 = vmatpush2.msra.mxu0 0.0
        %750 = vmatprep.subr.mxu0 0.0
        %751 = vmatpush2.msra.mxu0 0.0
        %752 = vmatprep.subr.mxu0 0.0
        %753 = vmatpush2.msra.mxu0 0.0
        %754 = vmatprep.mubr.f32.mxu0 0.0
        %755 = vmatmul.mubr.f32.gmra.mxu0 %v688
        %v756 = vpop.f32.mrf.mxu0
        %v757 = vadd.f32 %v685, %v756
        %v758 = vpop.f32.mrf.mxu0
        %759 = vdwg.mxu0
        %v760 = vld [vmem:[#allocation11] sm:$0xff]
        %v761 = vld [vmem:[#allocation11 + $0x8] sm:$0xff]
        %v762 = vld [vmem:[#allocation11 + $0x10] sm:$0xff]
        %v763 = vld [vmem:[#allocation11 + $0x18] sm:$0xff]
        %v764 = vld [vmem:[%s8] sm:$0x1]
        %v766 = vlaneseq
        %v767 = vshrl.u32 %v766, 7
        %v768 = vsub.s32 0, %v767
        %v769 = vrot.slane %v764, %v768
        %v772 = vsel %vm602, %v590, 0
        %774 = vmatprep.subr.mxu0 0.0
        %775 = vmatpush1.msra.mxu0 0.0
        %776 = vmatprep.subr.mxu0 0.0
        %777 = vmatpush1.msra.mxu0 0.0
        %778 = vmatprep.subr.mxu0 0.0
        %779 = vmatpush1.msra.mxu0 0.0
        %780 = vmatprep.subr.mxu0 0.0
        %781 = vmatpush1.msra.mxu0 0.0
        %782 = vmatprep.subr.mxu0 0.0
        %783 = vmatpush1.msra.mxu0 0.0
        %784 = vmatprep.subr.mxu0 0.0
        %785 = vmatpush1.msra.mxu0 0.0
        %786 = vmatprep.subr.mxu0 0.0
        %787 = vmatpush1.msra.mxu0 0.0
        %788 = vmatprep.subr.mxu0 0.0
        %789 = vmatpush1.msra.mxu0 0.0
        %790 = vmatprep.subr.mxu0 0.0
        %791 = vmatpush1.msra.mxu0 0.0
        %792 = vmatprep.subr.mxu0 0.0
        %793 = vmatpush1.msra.mxu0 0.0
        %794 = vmatprep.subr.mxu0 0.0
        %795 = vmatpush1.msra.mxu0 0.0
        %796 = vmatprep.subr.mxu0 0.0
        %797 = vmatpush1.msra.mxu0 0.0
        %798 = vmatprep.subr.mxu0 0.0
        %799 = vmatpush1.msra.mxu0 %v763
        %800 = vmatprep.subr.mxu0 0.0
        %801 = vmatpush1.msra.mxu0 %v762
        %802 = vmatprep.subr.mxu0 0.0
        %803 = vmatpush1.msra.mxu0 %v761
        %804 = vmatprep.subr.mxu0 0.0
        %805 = vmatpush1.msra.mxu0 %v760
        %806 = vmatprep.subr.mxu0 0.0
        %807 = vmatpush2.msra.mxu0 0.0
        %808 = vmatprep.subr.mxu0 0.0
        %809 = vmatpush2.msra.mxu0 0.0
        %810 = vmatprep.subr.mxu0 0.0
        %811 = vmatpush2.msra.mxu0 0.0
        %812 = vmatprep.subr.mxu0 0.0
        %813 = vmatpush2.msra.mxu0 0.0
        %814 = vmatprep.subr.mxu0 0.0
        %815 = vmatpush2.msra.mxu0 0.0
        %816 = vmatprep.subr.mxu0 0.0
        %817 = vmatpush2.msra.mxu0 0.0
        %818 = vmatprep.subr.mxu0 0.0
        %819 = vmatpush2.msra.mxu0 0.0
        %820 = vmatprep.subr.mxu0 0.0
        %821 = vmatpush2.msra.mxu0 0.0
        %822 = vmatprep.subr.mxu0 0.0
        %823 = vmatpush2.msra.mxu0 0.0
        %824 = vmatprep.subr.mxu0 0.0
        %825 = vmatpush2.msra.mxu0 0.0
        %826 = vmatprep.subr.mxu0 0.0
        %827 = vmatpush2.msra.mxu0 0.0
        %828 = vmatprep.subr.mxu0 0.0
        %829 = vmatpush2.msra.mxu0 0.0
        %830 = vmatprep.subr.mxu0 0.0
        %831 = vmatpush2.msra.mxu0 0.0
        %832 = vmatprep.subr.mxu0 0.0
        %833 = vmatpush2.msra.mxu0 0.0
        %834 = vmatprep.subr.mxu0 0.0
        %835 = vmatpush2.msra.mxu0 0.0
        %836 = vmatprep.subr.mxu0 0.0
        %837 = vmatpush2.msra.mxu0 0.0
        %838 = vmatprep.mubr.f32.mxu0 0.0
        %839 = vmatmul.mubr.f32.gmra.mxu0 %v772
        %v840 = vpop.f32.mrf.mxu0
        %v841 = vadd.f32 %v769, %v840
        %v842 = vpop.f32.mrf.mxu0
        %843 = vdwg.mxu0
        %v844 = vmul.f32 %v673, 0.35355338
        %846 = vrot.lane.b32.xlu0 %v844, 120
        %v847 = vpop.permute.xlu0 %846
        %849 = vrot.lane.b32.xlu0 %v844, 112
        %v850 = vpop.permute.xlu0 %849
        %852 = vrot.lane.b32.xlu0 %v844, 104
        %v853 = vpop.permute.xlu0 %852
        %v855 = vcombine.low %v844, %v850
        %v856 = vcombine.high %v844, %v850
        %v858 = vunpack.c.l.s4 1983009808
        %v859 = vunpack.c.0.s8 %v858
        %v860 = vlaneseq
        %v861 = vshrl.u32 %v860, 7
        %v862 = vsub.s32 %v859, %v861
        %v863 = vrot.slane %v855, %v862
        %v865 = vunpack.c.l.s4 1983009808
        %v866 = vunpack.c.0.s8 %v865
        %v867 = vlaneseq
        %v868 = vshrl.u32 %v867, 7
        %v869 = vsub.s32 %v866, %v868
        %v870 = vrot.slane %v856, %v869
        %v871 = vcombine.low %v847, %v853
        %v872 = vcombine.high %v847, %v853
        %v874 = vunpack.c.l.s4 1983009808
        %v875 = vunpack.c.0.s8 %v874
        %v876 = vlaneseq
        %v877 = vshrl.u32 %v876, 7
        %v878 = vsub.s32 %v875, %v877
        %v879 = vrot.slane %v871, %v878
        %v881 = vunpack.c.l.s4 1983009808
        %v882 = vunpack.c.0.s8 %v881
        %v883 = vlaneseq
        %v884 = vshrl.u32 %v883, 7
        %v885 = vsub.s32 %v882, %v884
        %v886 = vrot.slane %v872, %v885
        %v887 = vcombine.low %v863, %v879
        %v888 = vcombine.high %v863, %v879
        %v890 = vunpack.c.l.s4 1934713408
        %v891 = vunpack.c.0.s8 %v890
        %v892 = vlaneseq
        %v893 = vshrl.u32 %v892, 7
        %v894 = vsub.s32 %v891, %v893
        %v895 = vrot.slane %v887, %v894
        %v897 = vunpack.c.l.s4 1934713408
        %v898 = vunpack.c.0.s8 %v897
        %v899 = vlaneseq
        %v900 = vshrl.u32 %v899, 7
        %v901 = vsub.s32 %v898, %v900
        %v902 = vrot.slane %v888, %v901
        %v903 = vcombine.low %v870, %v886
        %v904 = vcombine.high %v870, %v886
        %v906 = vunpack.c.l.s4 1934713408
        %v907 = vunpack.c.0.s8 %v906
        %v908 = vlaneseq
        %v909 = vshrl.u32 %v908, 7
        %v910 = vsub.s32 %v907, %v909
        %v911 = vrot.slane %v903, %v910
        %v913 = vunpack.c.l.s4 1934713408
        %v914 = vunpack.c.0.s8 %v913
        %v915 = vlaneseq
        %v916 = vshrl.u32 %v915, 7
        %v917 = vsub.s32 %v914, %v916
        %v918 = vrot.slane %v904, %v917
        %v919 = vcombine.high %v895, 0.0
        %v920 = vcombine.high %v902, 0.0
        %v921 = vcombine.high %v911, 0.0
        %v922 = vcombine.high %v918, 0.0
        %v923 = vcombine.low %v895, %v902
        %v925 = vunpack.c.l.s4 1983009808
        %v926 = vunpack.c.0.s8 %v925
        %v927 = vlaneseq
        %v928 = vshrl.u32 %v927, 7
        %v929 = vsub.s32 %v926, %v928
        %v930 = vrot.slane %v923, %v929
        %v931 = vcombine.low %v919, %v920
        %v933 = vunpack.c.l.s4 1983009808
        %v934 = vunpack.c.0.s8 %v933
        %v935 = vlaneseq
        %v936 = vshrl.u32 %v935, 7
        %v937 = vsub.s32 %v934, %v936
        %v938 = vrot.slane %v931, %v937
        %v939 = vcombine.low %v911, %v918
        %v941 = vunpack.c.l.s4 1983009808
        %v942 = vunpack.c.0.s8 %v941
        %v943 = vlaneseq
        %v944 = vshrl.u32 %v943, 7
        %v945 = vsub.s32 %v942, %v944
        %v946 = vrot.slane %v939, %v945
        %v947 = vcombine.low %v921, %v922
        %v949 = vunpack.c.l.s4 1983009808
        %v950 = vunpack.c.0.s8 %v949
        %v951 = vlaneseq
        %v952 = vshrl.u32 %v951, 7
        %v953 = vsub.s32 %v950, %v952
        %v954 = vrot.slane %v947, %v953
        %v955 = vcombine.low %v930, %v938
        %v956 = vcombine.high %v930, %v938
        %v958 = vunpack.c.l.s4 1934713408
        %v959 = vunpack.c.0.s8 %v958
        %v960 = vlaneseq
        %v961 = vshrl.u32 %v960, 7
        %v962 = vsub.s32 %v959, %v961
        %v963 = vrot.slane %v955, %v962
        %v965 = vunpack.c.l.s4 1934713408
        %v966 = vunpack.c.0.s8 %v965
        %v967 = vlaneseq
        %v968 = vshrl.u32 %v967, 7
        %v969 = vsub.s32 %v966, %v968
        %v970 = vrot.slane %v956, %v969
        %v971 = vcombine.low %v946, %v954
        %v972 = vcombine.high %v946, %v954
        %v974 = vunpack.c.l.s4 1934713408
        %v975 = vunpack.c.0.s8 %v974
        %v976 = vlaneseq
        %v977 = vshrl.u32 %v976, 7
        %v978 = vsub.s32 %v975, %v977
        %v979 = vrot.slane %v971, %v978
        %v981 = vunpack.c.l.s4 1934713408
        %v982 = vunpack.c.0.s8 %v981
        %v983 = vlaneseq
        %v984 = vshrl.u32 %v983, 7
        %v985 = vsub.s32 %v982, %v984
        %v986 = vrot.slane %v972, %v985
        %v987 = vcombine.low %v963, %v979
        %v988 = vcombine.high %v963, %v979
        %v989 = vcombine.low %v970, %v986
        %v990 = vcombine.high %v970, %v986
        %992 = vrot.lane.b32.xlu0 %v757, 120
        %v993 = vpop.permute.xlu0 %992
        %995 = vrot.lane.b32.xlu0 %v757, 112
        %v996 = vpop.permute.xlu0 %995
        %998 = vrot.lane.b32.xlu0 %v757, 104
        %v999 = vpop.permute.xlu0 %998
        %v1001 = vcombine.low %v757, %v996
        %v1002 = vcombine.high %v757, %v996
        %v1004 = vunpack.c.l.s4 1983009808
        %v1005 = vunpack.c.0.s8 %v1004
        %v1006 = vlaneseq
        %v1007 = vshrl.u32 %v1006, 7
        %v1008 = vsub.s32 %v1005, %v1007
        %v1009 = vrot.slane %v1001, %v1008
        %v1011 = vunpack.c.l.s4 1983009808
        %v1012 = vunpack.c.0.s8 %v1011
        %v1013 = vlaneseq
        %v1014 = vshrl.u32 %v1013, 7
        %v1015 = vsub.s32 %v1012, %v1014
        %v1016 = vrot.slane %v1002, %v1015
        %v1017 = vcombine.low %v993, %v999
        %v1018 = vcombine.high %v993, %v999
        %v1020 = vunpack.c.l.s4 1983009808
        %v1021 = vunpack.c.0.s8 %v1020
        %v1022 = vlaneseq
        %v1023 = vshrl.u32 %v1022, 7
        %v1024 = vsub.s32 %v1021, %v1023
        %v1025 = vrot.slane %v1017, %v1024
        %v1027 = vunpack.c.l.s4 1983009808
        %v1028 = vunpack.c.0.s8 %v1027
        %v1029 = vlaneseq
        %v1030 = vshrl.u32 %v1029, 7
        %v1031 = vsub.s32 %v1028, %v1030
        %v1032 = vrot.slane %v1018, %v1031
        %v1033 = vcombine.low %v1009, %v1025
        %v1034 = vcombine.high %v1009, %v1025
        %v1036 = vunpack.c.l.s4 1934713408
        %v1037 = vunpack.c.0.s8 %v1036
        %v1038 = vlaneseq
        %v1039 = vshrl.u32 %v1038, 7
        %v1040 = vsub.s32 %v1037, %v1039
        %v1041 = vrot.slane %v1033, %v1040
        %v1043 = vunpack.c.l.s4 1934713408
        %v1044 = vunpack.c.0.s8 %v1043
        %v1045 = vlaneseq
        %v1046 = vshrl.u32 %v1045, 7
        %v1047 = vsub.s32 %v1044, %v1046
        %v1048 = vrot.slane %v1034, %v1047
        %v1049 = vcombine.low %v1016, %v1032
        %v1050 = vcombine.high %v1016, %v1032
        %v1052 = vunpack.c.l.s4 1934713408
        %v1053 = vunpack.c.0.s8 %v1052
        %v1054 = vlaneseq
        %v1055 = vshrl.u32 %v1054, 7
        %v1056 = vsub.s32 %v1053, %v1055
        %v1057 = vrot.slane %v1049, %v1056
        %v1059 = vunpack.c.l.s4 1934713408
        %v1060 = vunpack.c.0.s8 %v1059
        %v1061 = vlaneseq
        %v1062 = vshrl.u32 %v1061, 7
        %v1063 = vsub.s32 %v1060, %v1062
        %v1064 = vrot.slane %v1050, %v1063
        %v1065 = vcombine.high %v1041, 0.0
        %v1066 = vcombine.high %v1048, 0.0
        %v1067 = vcombine.high %v1057, 0.0
        %v1068 = vcombine.high %v1064, 0.0
        %v1069 = vcombine.low %v1041, %v1048
        %v1071 = vunpack.c.l.s4 1983009808
        %v1072 = vunpack.c.0.s8 %v1071
        %v1073 = vlaneseq
        %v1074 = vshrl.u32 %v1073, 7
        %v1075 = vsub.s32 %v1072, %v1074
        %v1076 = vrot.slane %v1069, %v1075
        %v1077 = vcombine.low %v1065, %v1066
        %v1079 = vunpack.c.l.s4 1983009808
        %v1080 = vunpack.c.0.s8 %v1079
        %v1081 = vlaneseq
        %v1082 = vshrl.u32 %v1081, 7
        %v1083 = vsub.s32 %v1080, %v1082
        %v1084 = vrot.slane %v1077, %v1083
        %v1085 = vcombine.low %v1057, %v1064
        %v1087 = vunpack.c.l.s4 1983009808
        %v1088 = vunpack.c.0.s8 %v1087
        %v1089 = vlaneseq
        %v1090 = vshrl.u32 %v1089, 7
        %v1091 = vsub.s32 %v1088, %v1090
        %v1092 = vrot.slane %v1085, %v1091
        %v1093 = vcombine.low %v1067, %v1068
        %v1095 = vunpack.c.l.s4 1983009808
        %v1096 = vunpack.c.0.s8 %v1095
        %v1097 = vlaneseq
        %v1098 = vshrl.u32 %v1097, 7
        %v1099 = vsub.s32 %v1096, %v1098
        %v1100 = vrot.slane %v1093, %v1099
        %v1101 = vcombine.low %v1076, %v1084
        %v1102 = vcombine.high %v1076, %v1084
        %v1104 = vunpack.c.l.s4 1934713408
        %v1105 = vunpack.c.0.s8 %v1104
        %v1106 = vlaneseq
        %v1107 = vshrl.u32 %v1106, 7
        %v1108 = vsub.s32 %v1105, %v1107
        %v1109 = vrot.slane %v1101, %v1108
        %v1111 = vunpack.c.l.s4 1934713408
        %v1112 = vunpack.c.0.s8 %v1111
        %v1113 = vlaneseq
        %v1114 = vshrl.u32 %v1113, 7
        %v1115 = vsub.s32 %v1112, %v1114
        %v1116 = vrot.slane %v1102, %v1115
        %v1117 = vcombine.low %v1092, %v1100
        %v1118 = vcombine.high %v1092, %v1100
        %v1120 = vunpack.c.l.s4 1934713408
        %v1121 = vunpack.c.0.s8 %v1120
        %v1122 = vlaneseq
        %v1123 = vshrl.u32 %v1122, 7
        %v1124 = vsub.s32 %v1121, %v1123
        %v1125 = vrot.slane %v1117, %v1124
        %v1127 = vunpack.c.l.s4 1934713408
        %v1128 = vunpack.c.0.s8 %v1127
        %v1129 = vlaneseq
        %v1130 = vshrl.u32 %v1129, 7
        %v1131 = vsub.s32 %v1128, %v1130
        %v1132 = vrot.slane %v1118, %v1131
        %v1133 = vcombine.low %v1109, %v1125
        %v1134 = vcombine.high %v1109, %v1125
        %v1135 = vcombine.low %v1116, %v1132
        %v1136 = vcombine.high %v1116, %v1132
        %1138 = vrot.lane.b32.xlu0 %v841, 120
        %v1139 = vpop.permute.xlu0 %1138
        %1141 = vrot.lane.b32.xlu0 %v841, 112
        %v1142 = vpop.permute.xlu0 %1141
        %1144 = vrot.lane.b32.xlu0 %v841, 104
        %v1145 = vpop.permute.xlu0 %1144
        %v1147 = vcombine.low %v841, %v1142
        %v1148 = vcombine.high %v841, %v1142
        %v1150 = vunpack.c.l.s4 1983009808
        %v1151 = vunpack.c.0.s8 %v1150
        %v1152 = vlaneseq
        %v1153 = vshrl.u32 %v1152, 7
        %v1154 = vsub.s32 %v1151, %v1153
        %v1155 = vrot.slane %v1147, %v1154
        %v1157 = vunpack.c.l.s4 1983009808
        %v1158 = vunpack.c.0.s8 %v1157
        %v1159 = vlaneseq
        %v1160 = vshrl.u32 %v1159, 7
        %v1161 = vsub.s32 %v1158, %v1160
        %v1162 = vrot.slane %v1148, %v1161
        %v1163 = vcombine.low %v1139, %v1145
        %v1164 = vcombine.high %v1139, %v1145
        %v1166 = vunpack.c.l.s4 1983009808
        %v1167 = vunpack.c.0.s8 %v1166
        %v1168 = vlaneseq
        %v1169 = vshrl.u32 %v1168, 7
        %v1170 = vsub.s32 %v1167, %v1169
        %v1171 = vrot.slane %v1163, %v1170
        %v1173 = vunpack.c.l.s4 1983009808
        %v1174 = vunpack.c.0.s8 %v1173
        %v1175 = vlaneseq
        %v1176 = vshrl.u32 %v1175, 7
        %v1177 = vsub.s32 %v1174, %v1176
        %v1178 = vrot.slane %v1164, %v1177
        %v1179 = vcombine.low %v1155, %v1171
        %v1180 = vcombine.high %v1155, %v1171
        %v1182 = vunpack.c.l.s4 1934713408
        %v1183 = vunpack.c.0.s8 %v1182
        %v1184 = vlaneseq
        %v1185 = vshrl.u32 %v1184, 7
        %v1186 = vsub.s32 %v1183, %v1185
        %v1187 = vrot.slane %v1179, %v1186
        %v1189 = vunpack.c.l.s4 1934713408
        %v1190 = vunpack.c.0.s8 %v1189
        %v1191 = vlaneseq
        %v1192 = vshrl.u32 %v1191, 7
        %v1193 = vsub.s32 %v1190, %v1192
        %v1194 = vrot.slane %v1180, %v1193
        %v1195 = vcombine.low %v1162, %v1178
        %v1196 = vcombine.high %v1162, %v1178
        %v1198 = vunpack.c.l.s4 1934713408
        %v1199 = vunpack.c.0.s8 %v1198
        %v1200 = vlaneseq
        %v1201 = vshrl.u32 %v1200, 7
        %v1202 = vsub.s32 %v1199, %v1201
        %v1203 = vrot.slane %v1195, %v1202
        %v1205 = vunpack.c.l.s4 1934713408
        %v1206 = vunpack.c.0.s8 %v1205
        %v1207 = vlaneseq
        %v1208 = vshrl.u32 %v1207, 7
        %v1209 = vsub.s32 %v1206, %v1208
        %v1210 = vrot.slane %v1196, %v1209
        %v1211 = vcombine.high %v1187, 0.0
        %v1212 = vcombine.high %v1194, 0.0
        %v1213 = vcombine.high %v1203, 0.0
        %v1214 = vcombine.high %v1210, 0.0
        %v1215 = vcombine.low %v1187, %v1194
        %v1217 = vunpack.c.l.s4 1983009808
        %v1218 = vunpack.c.0.s8 %v1217
        %v1219 = vlaneseq
        %v1220 = vshrl.u32 %v1219, 7
        %v1221 = vsub.s32 %v1218, %v1220
        %v1222 = vrot.slane %v1215, %v1221
        %v1223 = vcombine.low %v1211, %v1212
        %v1225 = vunpack.c.l.s4 1983009808
        %v1226 = vunpack.c.0.s8 %v1225
        %v1227 = vlaneseq
        %v1228 = vshrl.u32 %v1227, 7
        %v1229 = vsub.s32 %v1226, %v1228
        %v1230 = vrot.slane %v1223, %v1229
        %v1231 = vcombine.low %v1203, %v1210
        %v1233 = vunpack.c.l.s4 1983009808
        %v1234 = vunpack.c.0.s8 %v1233
        %v1235 = vlaneseq
        %v1236 = vshrl.u32 %v1235, 7
        %v1237 = vsub.s32 %v1234, %v1236
        %v1238 = vrot.slane %v1231, %v1237
        %v1239 = vcombine.low %v1213, %v1214
        %v1241 = vunpack.c.l.s4 1983009808
        %v1242 = vunpack.c.0.s8 %v1241
        %v1243 = vlaneseq
        %v1244 = vshrl.u32 %v1243, 7
        %v1245 = vsub.s32 %v1242, %v1244
        %v1246 = vrot.slane %v1239, %v1245
        %v1247 = vcombine.low %v1222, %v1230
        %v1248 = vcombine.high %v1222, %v1230
        %v1250 = vunpack.c.l.s4 1934713408
        %v1251 = vunpack.c.0.s8 %v1250
        %v1252 = vlaneseq
        %v1253 = vshrl.u32 %v1252, 7
        %v1254 = vsub.s32 %v1251, %v1253
        %v1255 = vrot.slane %v1247, %v1254
        %v1257 = vunpack.c.l.s4 1934713408
        %v1258 = vunpack.c.0.s8 %v1257
        %v1259 = vlaneseq
        %v1260 = vshrl.u32 %v1259, 7
        %v1261 = vsub.s32 %v1258, %v1260
        %v1262 = vrot.slane %v1248, %v1261
        %v1263 = vcombine.low %v1238, %v1246
        %v1264 = vcombine.high %v1238, %v1246
        %v1266 = vunpack.c.l.s4 1934713408
        %v1267 = vunpack.c.0.s8 %v1266
        %v1268 = vlaneseq
        %v1269 = vshrl.u32 %v1268, 7
        %v1270 = vsub.s32 %v1267, %v1269
        %v1271 = vrot.slane %v1263, %v1270
        %v1273 = vunpack.c.l.s4 1934713408
        %v1274 = vunpack.c.0.s8 %v1273
        %v1275 = vlaneseq
        %v1276 = vshrl.u32 %v1275, 7
        %v1277 = vsub.s32 %v1274, %v1276
        %v1278 = vrot.slane %v1264, %v1277
        %v1279 = vcombine.low %v1255, %v1271
        %v1280 = vcombine.high %v1255, %v1271
        %v1281 = vcombine.low %v1262, %v1278
        %v1282 = vcombine.high %v1262, %v1278
        %vm1283 = vcmask 64512
        %v1285 = vsel %vm1283, %v987, 0
        %v1288 = vsel %vm1283, %v1133, 0
        %1290 = vmatprep.subr.mxu0 0.0
        %1291 = vmatpush1.xpose.msra.mxu0 0.0
        %1292 = vmatprep.subr.mxu0 0.0
        %1293 = vmatpush1.xpose.msra.mxu0 0.0
        %1294 = vmatprep.subr.mxu0 0.0
        %1295 = vmatpush1.xpose.msra.mxu0 0.0
        %1296 = vmatprep.subr.mxu0 0.0
        %1297 = vmatpush1.xpose.msra.mxu0 0.0
        %1298 = vmatprep.subr.mxu0 0.0
        %1299 = vmatpush1.xpose.msra.mxu0 0.0
        %1300 = vmatprep.subr.mxu0 0.0
        %1301 = vmatpush1.xpose.msra.mxu0 0.0
        %1302 = vmatprep.subr.mxu0 0.0
        %1303 = vmatpush1.xpose.msra.mxu0 0.0
        %1304 = vmatprep.subr.mxu0 0.0
        %1305 = vmatpush1.xpose.msra.mxu0 0.0
        %1306 = vmatprep.subr.mxu0 0.0
        %1307 = vmatpush1.xpose.msra.mxu0 0.0
        %1308 = vmatprep.subr.mxu0 0.0
        %1309 = vmatpush1.xpose.msra.mxu0 0.0
        %1310 = vmatprep.subr.mxu0 0.0
        %1311 = vmatpush1.xpose.msra.mxu0 0.0
        %1312 = vmatprep.subr.mxu0 0.0
        %1313 = vmatpush1.xpose.msra.mxu0 0.0
        %1314 = vmatprep.subr.mxu0 0.0
        %1315 = vmatpush1.xpose.msra.mxu0 0.0
        %1316 = vmatprep.subr.mxu0 0.0
        %1317 = vmatpush1.xpose.msra.mxu0 0.0
        %1318 = vmatprep.subr.mxu0 0.0
        %1319 = vmatpush1.xpose.msra.mxu0 0.0
        %1320 = vmatprep.subr.mxu0 0.0
        %1321 = vmatpush1.xpose.msra.mxu0 %v1288
        %1322 = vmatprep.subr.mxu0 0.0
        %1323 = vmatpush2.xpose.msra.mxu0 0.0
        %1324 = vmatprep.subr.mxu0 0.0
        %1325 = vmatpush2.xpose.msra.mxu0 0.0
        %1326 = vmatprep.subr.mxu0 0.0
        %1327 = vmatpush2.xpose.msra.mxu0 0.0
        %1328 = vmatprep.subr.mxu0 0.0
        %1329 = vmatpush2.xpose.msra.mxu0 0.0
        %1330 = vmatprep.subr.mxu0 0.0
        %1331 = vmatpush2.xpose.msra.mxu0 0.0
        %1332 = vmatprep.subr.mxu0 0.0
        %1333 = vmatpush2.xpose.msra.mxu0 0.0
        %1334 = vmatprep.subr.mxu0 0.0
        %1335 = vmatpush2.xpose.msra.mxu0 0.0
        %1336 = vmatprep.subr.mxu0 0.0
        %1337 = vmatpush2.xpose.msra.mxu0 0.0
        %1338 = vmatprep.subr.mxu0 0.0
        %1339 = vmatpush2.xpose.msra.mxu0 0.0
        %1340 = vmatprep.subr.mxu0 0.0
        %1341 = vmatpush2.xpose.msra.mxu0 0.0
        %1342 = vmatprep.subr.mxu0 0.0
        %1343 = vmatpush2.xpose.msra.mxu0 0.0
        %1344 = vmatprep.subr.mxu0 0.0
        %1345 = vmatpush2.xpose.msra.mxu0 0.0
        %1346 = vmatprep.subr.mxu0 0.0
        %1347 = vmatpush2.xpose.msra.mxu0 0.0
        %1348 = vmatprep.subr.mxu0 0.0
        %1349 = vmatpush2.xpose.msra.mxu0 0.0
        %1350 = vmatprep.subr.mxu0 0.0
        %1351 = vmatpush2.xpose.msra.mxu0 0.0
        %1352 = vmatprep.subr.mxu0 0.0
        %1353 = vmatpush2.xpose.msra.mxu0 0.0
        %1354 = vmatprep.mubr.f32.mxu0 0.0
        %1355 = vmatmul.mubr.f32.gmra.mxu0 %v1285
        %v1356 = vpop.f32.mrf.mxu0
        %v1357 = vadd.f32 0.0, %v1356
        %v1358 = vpop.f32.mrf.mxu0
        %1359 = vdwg.mxu0
        %v1361 = vsel %vm1283, %v988, 0
        %v1364 = vsel %vm1283, %v1134, 0
        %1366 = vmatprep.subr.mxu0 0.0
        %1367 = vmatpush1.xpose.msra.mxu0 0.0
        %1368 = vmatprep.subr.mxu0 0.0
        %1369 = vmatpush1.xpose.msra.mxu0 0.0
        %1370 = vmatprep.subr.mxu0 0.0
        %1371 = vmatpush1.xpose.msra.mxu0 0.0
        %1372 = vmatprep.subr.mxu0 0.0
        %1373 = vmatpush1.xpose.msra.mxu0 0.0
        %1374 = vmatprep.subr.mxu0 0.0
        %1375 = vmatpush1.xpose.msra.mxu0 0.0
        %1376 = vmatprep.subr.mxu0 0.0
        %1377 = vmatpush1.xpose.msra.mxu0 0.0
        %1378 = vmatprep.subr.mxu0 0.0
        %1379 = vmatpush1.xpose.msra.mxu0 0.0
        %1380 = vmatprep.subr.mxu0 0.0
        %1381 = vmatpush1.xpose.msra.mxu0 0.0
        %1382 = vmatprep.subr.mxu0 0.0
        %1383 = vmatpush1.xpose.msra.mxu0 0.0
        %1384 = vmatprep.subr.mxu0 0.0
        %1385 = vmatpush1.xpose.msra.mxu0 0.0
        %1386 = vmatprep.subr.mxu0 0.0
        %1387 = vmatpush1.xpose.msra.mxu0 0.0
        %1388 = vmatprep.subr.mxu0 0.0
        %1389 = vmatpush1.xpose.msra.mxu0 0.0
        %1390 = vmatprep.subr.mxu0 0.0
        %1391 = vmatpush1.xpose.msra.mxu0 0.0
        %1392 = vmatprep.subr.mxu0 0.0
        %1393 = vmatpush1.xpose.msra.mxu0 0.0
        %1394 = vmatprep.subr.mxu0 0.0
        %1395 = vmatpush1.xpose.msra.mxu0 0.0
        %1396 = vmatprep.subr.mxu0 0.0
        %1397 = vmatpush1.xpose.msra.mxu0 %v1364
        %1398 = vmatprep.subr.mxu0 0.0
        %1399 = vmatpush2.xpose.msra.mxu0 0.0
        %1400 = vmatprep.subr.mxu0 0.0
        %1401 = vmatpush2.xpose.msra.mxu0 0.0
        %1402 = vmatprep.subr.mxu0 0.0
        %1403 = vmatpush2.xpose.msra.mxu0 0.0
        %1404 = vmatprep.subr.mxu0 0.0
        %1405 = vmatpush2.xpose.msra.mxu0 0.0
        %1406 = vmatprep.subr.mxu0 0.0
        %1407 = vmatpush2.xpose.msra.mxu0 0.0
        %1408 = vmatprep.subr.mxu0 0.0
        %1409 = vmatpush2.xpose.msra.mxu0 0.0
        %1410 = vmatprep.subr.mxu0 0.0
        %1411 = vmatpush2.xpose.msra.mxu0 0.0
        %1412 = vmatprep.subr.mxu0 0.0
        %1413 = vmatpush2.xpose.msra.mxu0 0.0
        %1414 = vmatprep.subr.mxu0 0.0
        %1415 = vmatpush2.xpose.msra.mxu0 0.0
        %1416 = vmatprep.subr.mxu0 0.0
        %1417 = vmatpush2.xpose.msra.mxu0 0.0
        %1418 = vmatprep.subr.mxu0 0.0
        %1419 = vmatpush2.xpose.msra.mxu0 0.0
        %1420 = vmatprep.subr.mxu0 0.0
        %1421 = vmatpush2.xpose.msra.mxu0 0.0
        %1422 = vmatprep.subr.mxu0 0.0
        %1423 = vmatpush2.xpose.msra.mxu0 0.0
        %1424 = vmatprep.subr.mxu0 0.0
        %1425 = vmatpush2.xpose.msra.mxu0 0.0
        %1426 = vmatprep.subr.mxu0 0.0
        %1427 = vmatpush2.xpose.msra.mxu0 0.0
        %1428 = vmatprep.subr.mxu0 0.0
        %1429 = vmatpush2.xpose.msra.mxu0 0.0
        %1430 = vmatprep.mubr.f32.mxu0 0.0
        %1431 = vmatmul.mubr.f32.gmra.mxu0 %v1361
        %v1432 = vpop.f32.mrf.mxu0
        %v1433 = vadd.f32 0.0, %v1432
        %v1434 = vpop.f32.mrf.mxu0
        %1435 = vdwg.mxu0
        %v1437 = vsel %vm1283, %v989, 0
        %v1440 = vsel %vm1283, %v1135, 0
        %1442 = vmatprep.subr.mxu0 0.0
        %1443 = vmatpush1.xpose.msra.mxu0 0.0
        %1444 = vmatprep.subr.mxu0 0.0
        %1445 = vmatpush1.xpose.msra.mxu0 0.0
        %1446 = vmatprep.subr.mxu0 0.0
        %1447 = vmatpush1.xpose.msra.mxu0 0.0
        %1448 = vmatprep.subr.mxu0 0.0
        %1449 = vmatpush1.xpose.msra.mxu0 0.0
        %1450 = vmatprep.subr.mxu0 0.0
        %1451 = vmatpush1.xpose.msra.mxu0 0.0
        %1452 = vmatprep.subr.mxu0 0.0
        %1453 = vmatpush1.xpose.msra.mxu0 0.0
        %1454 = vmatprep.subr.mxu0 0.0
        %1455 = vmatpush1.xpose.msra.mxu0 0.0
        %1456 = vmatprep.subr.mxu0 0.0
        %1457 = vmatpush1.xpose.msra.mxu0 0.0
        %1458 = vmatprep.subr.mxu0 0.0
        %1459 = vmatpush1.xpose.msra.mxu0 0.0
        %1460 = vmatprep.subr.mxu0 0.0
        %1461 = vmatpush1.xpose.msra.mxu0 0.0
        %1462 = vmatprep.subr.mxu0 0.0
        %1463 = vmatpush1.xpose.msra.mxu0 0.0
        %1464 = vmatprep.subr.mxu0 0.0
        %1465 = vmatpush1.xpose.msra.mxu0 0.0
        %1466 = vmatprep.subr.mxu0 0.0
        %1467 = vmatpush1.xpose.msra.mxu0 0.0
        %1468 = vmatprep.subr.mxu0 0.0
        %1469 = vmatpush1.xpose.msra.mxu0 0.0
        %1470 = vmatprep.subr.mxu0 0.0
        %1471 = vmatpush1.xpose.msra.mxu0 0.0
        %1472 = vmatprep.subr.mxu0 0.0
        %1473 = vmatpush1.xpose.msra.mxu0 %v1440
        %1474 = vmatprep.subr.mxu0 0.0
        %1475 = vmatpush2.xpose.msra.mxu0 0.0
        %1476 = vmatprep.subr.mxu0 0.0
        %1477 = vmatpush2.xpose.msra.mxu0 0.0
        %1478 = vmatprep.subr.mxu0 0.0
        %1479 = vmatpush2.xpose.msra.mxu0 0.0
        %1480 = vmatprep.subr.mxu0 0.0
        %1481 = vmatpush2.xpose.msra.mxu0 0.0
        %1482 = vmatprep.subr.mxu0 0.0
        %1483 = vmatpush2.xpose.msra.mxu0 0.0
        %1484 = vmatprep.subr.mxu0 0.0
        %1485 = vmatpush2.xpose.msra.mxu0 0.0
        %1486 = vmatprep.subr.mxu0 0.0
        %1487 = vmatpush2.xpose.msra.mxu0 0.0
        %1488 = vmatprep.subr.mxu0 0.0
        %1489 = vmatpush2.xpose.msra.mxu0 0.0
        %1490 = vmatprep.subr.mxu0 0.0
        %1491 = vmatpush2.xpose.msra.mxu0 0.0
        %1492 = vmatprep.subr.mxu0 0.0
        %1493 = vmatpush2.xpose.msra.mxu0 0.0
        %1494 = vmatprep.subr.mxu0 0.0
        %1495 = vmatpush2.xpose.msra.mxu0 0.0
        %1496 = vmatprep.subr.mxu0 0.0
        %1497 = vmatpush2.xpose.msra.mxu0 0.0
        %1498 = vmatprep.subr.mxu0 0.0
        %1499 = vmatpush2.xpose.msra.mxu0 0.0
        %1500 = vmatprep.subr.mxu0 0.0
        %1501 = vmatpush2.xpose.msra.mxu0 0.0
        %1502 = vmatprep.subr.mxu0 0.0
        %1503 = vmatpush2.xpose.msra.mxu0 0.0
        %1504 = vmatprep.subr.mxu0 0.0
        %1505 = vmatpush2.xpose.msra.mxu0 0.0
        %1506 = vmatprep.mubr.f32.mxu0 0.0
        %1507 = vmatmul.mubr.f32.gmra.mxu0 %v1437
        %v1508 = vpop.f32.mrf.mxu0
        %v1509 = vadd.f32 0.0, %v1508
        %v1510 = vpop.f32.mrf.mxu0
        %1511 = vdwg.mxu0
        %v1513 = vsel %vm1283, %v990, 0
        %v1516 = vsel %vm1283, %v1136, 0
        %1518 = vmatprep.subr.mxu0 0.0
        %1519 = vmatpush1.xpose.msra.mxu0 0.0
        %1520 = vmatprep.subr.mxu0 0.0
        %1521 = vmatpush1.xpose.msra.mxu0 0.0
        %1522 = vmatprep.subr.mxu0 0.0
        %1523 = vmatpush1.xpose.msra.mxu0 0.0
        %1524 = vmatprep.subr.mxu0 0.0
        %1525 = vmatpush1.xpose.msra.mxu0 0.0
        %1526 = vmatprep.subr.mxu0 0.0
        %1527 = vmatpush1.xpose.msra.mxu0 0.0
        %1528 = vmatprep.subr.mxu0 0.0
        %1529 = vmatpush1.xpose.msra.mxu0 0.0
        %1530 = vmatprep.subr.mxu0 0.0
        %1531 = vmatpush1.xpose.msra.mxu0 0.0
        %1532 = vmatprep.subr.mxu0 0.0
        %1533 = vmatpush1.xpose.msra.mxu0 0.0
        %1534 = vmatprep.subr.mxu0 0.0
        %1535 = vmatpush1.xpose.msra.mxu0 0.0
        %1536 = vmatprep.subr.mxu0 0.0
        %1537 = vmatpush1.xpose.msra.mxu0 0.0
        %1538 = vmatprep.subr.mxu0 0.0
        %1539 = vmatpush1.xpose.msra.mxu0 0.0
        %1540 = vmatprep.subr.mxu0 0.0
        %1541 = vmatpush1.xpose.msra.mxu0 0.0
        %1542 = vmatprep.subr.mxu0 0.0
        %1543 = vmatpush1.xpose.msra.mxu0 0.0
        %1544 = vmatprep.subr.mxu0 0.0
        %1545 = vmatpush1.xpose.msra.mxu0 0.0
        %1546 = vmatprep.subr.mxu0 0.0
        %1547 = vmatpush1.xpose.msra.mxu0 0.0
        %1548 = vmatprep.subr.mxu0 0.0
        %1549 = vmatpush1.xpose.msra.mxu0 %v1516
        %1550 = vmatprep.subr.mxu0 0.0
        %1551 = vmatpush2.xpose.msra.mxu0 0.0
        %1552 = vmatprep.subr.mxu0 0.0
        %1553 = vmatpush2.xpose.msra.mxu0 0.0
        %1554 = vmatprep.subr.mxu0 0.0
        %1555 = vmatpush2.xpose.msra.mxu0 0.0
        %1556 = vmatprep.subr.mxu0 0.0
        %1557 = vmatpush2.xpose.msra.mxu0 0.0
        %1558 = vmatprep.subr.mxu0 0.0
        %1559 = vmatpush2.xpose.msra.mxu0 0.0
        %1560 = vmatprep.subr.mxu0 0.0
        %1561 = vmatpush2.xpose.msra.mxu0 0.0
        %1562 = vmatprep.subr.mxu0 0.0
        %1563 = vmatpush2.xpose.msra.mxu0 0.0
        %1564 = vmatprep.subr.mxu0 0.0
        %1565 = vmatpush2.xpose.msra.mxu0 0.0
        %1566 = vmatprep.subr.mxu0 0.0
        %1567 = vmatpush2.xpose.msra.mxu0 0.0
        %1568 = vmatprep.subr.mxu0 0.0
        %1569 = vmatpush2.xpose.msra.mxu0 0.0
        %1570 = vmatprep.subr.mxu0 0.0
        %1571 = vmatpush2.xpose.msra.mxu0 0.0
        %1572 = vmatprep.subr.mxu0 0.0
        %1573 = vmatpush2.xpose.msra.mxu0 0.0
        %1574 = vmatprep.subr.mxu0 0.0
        %1575 = vmatpush2.xpose.msra.mxu0 0.0
        %1576 = vmatprep.subr.mxu0 0.0
        %1577 = vmatpush2.xpose.msra.mxu0 0.0
        %1578 = vmatprep.subr.mxu0 0.0
        %1579 = vmatpush2.xpose.msra.mxu0 0.0
        %1580 = vmatprep.subr.mxu0 0.0
        %1581 = vmatpush2.xpose.msra.mxu0 0.0
        %1582 = vmatprep.mubr.f32.mxu0 0.0
        %1583 = vmatmul.mubr.f32.gmra.mxu0 %v1513
        %v1584 = vpop.f32.mrf.mxu0
        %v1585 = vadd.f32 0.0, %v1584
        %v1586 = vpop.f32.mrf.mxu0
        %1587 = vdwg.mxu0
        %v1588 = vsel %vm1283, %v1357, -inf
        %1589 = vmax.xlane.f32.xlu0 %v1588
        %v1590 = vpop.xlane.xlu0 %1589
        %v1591 = vsel %vm1283, %v1433, -inf
        %1592 = vmax.xlane.f32.xlu0 %v1591
        %v1593 = vpop.xlane.xlu0 %1592
        %v1594 = vsel %vm1283, %v1509, -inf
        %1595 = vmax.xlane.f32.xlu0 %v1594
        %v1596 = vpop.xlane.xlu0 %1595
        %v1597 = vsel %vm1283, %v1585, -inf
        %1598 = vmax.xlane.f32.xlu0 %v1597
        %v1599 = vpop.xlane.xlu0 %1598
        %v1600 = vsub.f32 %v1357, %v1590
        %v1601 = vsub.f32 %v1433, %v1593
        %v1602 = vsub.f32 %v1509, %v1596
        %v1603 = vsub.f32 %v1585, %v1599
        %v1604 = vmul.f32 %v1600, 1.442695
        %v1605 = vpow.pop %v1604
        %v1606 = vmul.f32 %v1601, 1.442695
        %v1607 = vpow.pop %v1606
        %v1608 = vmul.f32 %v1602, 1.442695
        %v1609 = vpow.pop %v1608
        %v1610 = vmul.f32 %v1603, 1.442695
        %v1611 = vpow.pop %v1610
        %v1612 = vsel %vm1283, %v1605, 0.0
        %1613 = vadd.xlane.f32.xlu0 %v1612
        %v1614 = vpop.xlane.xlu0 %1613
        %v1615 = vsel %vm1283, %v1607, 0.0
        %1616 = vadd.xlane.f32.xlu0 %v1615
        %v1617 = vpop.xlane.xlu0 %1616
        %v1618 = vsel %vm1283, %v1609, 0.0
        %1619 = vadd.xlane.f32.xlu0 %v1618
        %v1620 = vpop.xlane.xlu0 %1619
        %v1621 = vsel %vm1283, %v1611, 0.0
        %1622 = vadd.xlane.f32.xlu0 %v1621
        %v1623 = vpop.xlane.xlu0 %1622
        %v1624 = vrcp.pop %v1614
        %v1625 = vrcp.pop %v1617
        %v1626 = vrcp.pop %v1620
        %v1627 = vrcp.pop %v1623
        %v1628 = vmul.f32 %v1605, %v1624
        %v1629 = vmul.f32 %v1607, %v1625
        %v1630 = vmul.f32 %v1609, %v1626
        %v1631 = vmul.f32 %v1611, %v1627
        %1632 = vst.msk [vmem:[%s587] sm:$0xff] %vm1283, %v1628
        %1633 = vst.msk [vmem:[%s587 + $0x8] sm:$0xff] %vm1283, %v1629
        %1634 = vst.msk [vmem:[%s587 + $0x10] sm:$0xff] %vm1283, %v1630
        %1635 = vst.msk [vmem:[%s587 + $0x18] sm:$0xff] %vm1283, %v1631
        %v1637 = vsel %vm1283, %v1628, 0
        %1639 = vmatprep.subr.mxu0 0.0
        %1640 = vmatpush1.msra.mxu0 0.0
        %1641 = vmatprep.subr.mxu0 0.0
        %1642 = vmatpush1.msra.mxu0 0.0
        %1643 = vmatprep.subr.mxu0 0.0
        %1644 = vmatpush1.msra.mxu0 0.0
        %1645 = vmatprep.subr.mxu0 0.0
        %1646 = vmatpush1.msra.mxu0 0.0
        %1647 = vmatprep.subr.mxu0 0.0
        %1648 = vmatpush1.msra.mxu0 0.0
        %1649 = vmatprep.subr.mxu0 0.0
        %1650 = vmatpush1.msra.mxu0 0.0
        %1651 = vmatprep.subr.mxu0 0.0
        %1652 = vmatpush1.msra.mxu0 0.0
        %1653 = vmatprep.subr.mxu0 0.0
        %1654 = vmatpush1.msra.mxu0 0.0
        %1655 = vmatprep.subr.mxu0 0.0
        %1656 = vmatpush1.msra.mxu0 0.0
        %1657 = vmatprep.subr.mxu0 0.0
        %1658 = vmatpush1.msra.mxu0 0.0
        %1659 = vmatprep.subr.mxu0 0.0
        %1660 = vmatpush1.msra.mxu0 0.0
        %1661 = vmatprep.subr.mxu0 0.0
        %1662 = vmatpush1.msra.mxu0 0.0
        %1663 = vmatprep.subr.mxu0 0.0
        %1664 = vmatpush1.msra.mxu0 0.0
        %1665 = vmatprep.subr.mxu0 0.0
        %1666 = vmatpush1.msra.mxu0 0.0
        %1667 = vmatprep.subr.mxu0 0.0
        %1668 = vmatpush1.msra.mxu0 0.0
        %1669 = vmatprep.subr.mxu0 0.0
        %1670 = vmatpush1.msra.mxu0 %v1279
        %1671 = vmatprep.subr.mxu0 0.0
        %1672 = vmatpush2.msra.mxu0 0.0
        %1673 = vmatprep.subr.mxu0 0.0
        %1674 = vmatpush2.msra.mxu0 0.0
        %1675 = vmatprep.subr.mxu0 0.0
        %1676 = vmatpush2.msra.mxu0 0.0
        %1677 = vmatprep.subr.mxu0 0.0
        %1678 = vmatpush2.msra.mxu0 0.0
        %1679 = vmatprep.subr.mxu0 0.0
        %1680 = vmatpush2.msra.mxu0 0.0
        %1681 = vmatprep.subr.mxu0 0.0
        %1682 = vmatpush2.msra.mxu0 0.0
        %1683 = vmatprep.subr.mxu0 0.0
        %1684 = vmatpush2.msra.mxu0 0.0
        %1685 = vmatprep.subr.mxu0 0.0
        %1686 = vmatpush2.msra.mxu0 0.0
        %1687 = vmatprep.subr.mxu0 0.0
        %1688 = vmatpush2.msra.mxu0 0.0
        %1689 = vmatprep.subr.mxu0 0.0
        %1690 = vmatpush2.msra.mxu0 0.0
        %1691 = vmatprep.subr.mxu0 0.0
        %1692 = vmatpush2.msra.mxu0 0.0
        %1693 = vmatprep.subr.mxu0 0.0
        %1694 = vmatpush2.msra.mxu0 0.0
        %1695 = vmatprep.subr.mxu0 0.0
        %1696 = vmatpush2.msra.mxu0 0.0
        %1697 = vmatprep.subr.mxu0 0.0
        %1698 = vmatpush2.msra.mxu0 0.0
        %1699 = vmatprep.subr.mxu0 0.0
        %1700 = vmatpush2.msra.mxu0 0.0
        %1701 = vmatprep.subr.mxu0 0.0
        %1702 = vmatpush2.msra.mxu0 0.0
        %1703 = vmatprep.mubr.f32.mxu0 0.0
        %1704 = vmatmul.mubr.f32.gmra.mxu0 %v1637
        %v1705 = vpop.f32.mrf.mxu0
        %v1706 = vadd.f32 0.0, %v1705
        %v1707 = vpop.f32.mrf.mxu0
        %1708 = vdwg.mxu0
        %v1710 = vsel %vm1283, %v1629, 0
        %1712 = vmatprep.subr.mxu0 0.0
        %1713 = vmatpush1.msra.mxu0 0.0
        %1714 = vmatprep.subr.mxu0 0.0
        %1715 = vmatpush1.msra.mxu0 0.0
        %1716 = vmatprep.subr.mxu0 0.0
        %1717 = vmatpush1.msra.mxu0 0.0
        %1718 = vmatprep.subr.mxu0 0.0
        %1719 = vmatpush1.msra.mxu0 0.0
        %1720 = vmatprep.subr.mxu0 0.0
        %1721 = vmatpush1.msra.mxu0 0.0
        %1722 = vmatprep.subr.mxu0 0.0
        %1723 = vmatpush1.msra.mxu0 0.0
        %1724 = vmatprep.subr.mxu0 0.0
        %1725 = vmatpush1.msra.mxu0 0.0
        %1726 = vmatprep.subr.mxu0 0.0
        %1727 = vmatpush1.msra.mxu0 0.0
        %1728 = vmatprep.subr.mxu0 0.0
        %1729 = vmatpush1.msra.mxu0 0.0
        %1730 = vmatprep.subr.mxu0 0.0
        %1731 = vmatpush1.msra.mxu0 0.0
        %1732 = vmatprep.subr.mxu0 0.0
        %1733 = vmatpush1.msra.mxu0 0.0
        %1734 = vmatprep.subr.mxu0 0.0
        %1735 = vmatpush1.msra.mxu0 0.0
        %1736 = vmatprep.subr.mxu0 0.0
        %1737 = vmatpush1.msra.mxu0 0.0
        %1738 = vmatprep.subr.mxu0 0.0
        %1739 = vmatpush1.msra.mxu0 0.0
        %1740 = vmatprep.subr.mxu0 0.0
        %1741 = vmatpush1.msra.mxu0 0.0
        %1742 = vmatprep.subr.mxu0 0.0
        %1743 = vmatpush1.msra.mxu0 %v1280
        %1744 = vmatprep.subr.mxu0 0.0
        %1745 = vmatpush2.msra.mxu0 0.0
        %1746 = vmatprep.subr.mxu0 0.0
        %1747 = vmatpush2.msra.mxu0 0.0
        %1748 = vmatprep.subr.mxu0 0.0
        %1749 = vmatpush2.msra.mxu0 0.0
        %1750 = vmatprep.subr.mxu0 0.0
        %1751 = vmatpush2.msra.mxu0 0.0
        %1752 = vmatprep.subr.mxu0 0.0
        %1753 = vmatpush2.msra.mxu0 0.0
        %1754 = vmatprep.subr.mxu0 0.0
        %1755 = vmatpush2.msra.mxu0 0.0
        %1756 = vmatprep.subr.mxu0 0.0
        %1757 = vmatpush2.msra.mxu0 0.0
        %1758 = vmatprep.subr.mxu0 0.0
        %1759 = vmatpush2.msra.mxu0 0.0
        %1760 = vmatprep.subr.mxu0 0.0
        %1761 = vmatpush2.msra.mxu0 0.0
        %1762 = vmatprep.subr.mxu0 0.0
        %1763 = vmatpush2.msra.mxu0 0.0
        %1764 = vmatprep.subr.mxu0 0.0
        %1765 = vmatpush2.msra.mxu0 0.0
        %1766 = vmatprep.subr.mxu0 0.0
        %1767 = vmatpush2.msra.mxu0 0.0
        %1768 = vmatprep.subr.mxu0 0.0
        %1769 = vmatpush2.msra.mxu0 0.0
        %1770 = vmatprep.subr.mxu0 0.0
        %1771 = vmatpush2.msra.mxu0 0.0
        %1772 = vmatprep.subr.mxu0 0.0
        %1773 = vmatpush2.msra.mxu0 0.0
        %1774 = vmatprep.subr.mxu0 0.0
        %1775 = vmatpush2.msra.mxu0 0.0
        %1776 = vmatprep.mubr.f32.mxu0 0.0
        %1777 = vmatmul.mubr.f32.gmra.mxu0 %v1710
        %v1778 = vpop.f32.mrf.mxu0
        %v1779 = vadd.f32 0.0, %v1778
        %v1780 = vpop.f32.mrf.mxu0
        %1781 = vdwg.mxu0
        %v1783 = vsel %vm1283, %v1630, 0
        %1785 = vmatprep.subr.mxu0 0.0
        %1786 = vmatpush1.msra.mxu0 0.0
        %1787 = vmatprep.subr.mxu0 0.0
        %1788 = vmatpush1.msra.mxu0 0.0
        %1789 = vmatprep.subr.mxu0 0.0
        %1790 = vmatpush1.msra.mxu0 0.0
        %1791 = vmatprep.subr.mxu0 0.0
        %1792 = vmatpush1.msra.mxu0 0.0
        %1793 = vmatprep.subr.mxu0 0.0
        %1794 = vmatpush1.msra.mxu0 0.0
        %1795 = vmatprep.subr.mxu0 0.0
        %1796 = vmatpush1.msra.mxu0 0.0
        %1797 = vmatprep.subr.mxu0 0.0
        %1798 = vmatpush1.msra.mxu0 0.0
        %1799 = vmatprep.subr.mxu0 0.0
        %1800 = vmatpush1.msra.mxu0 0.0
        %1801 = vmatprep.subr.mxu0 0.0
        %1802 = vmatpush1.msra.mxu0 0.0
        %1803 = vmatprep.subr.mxu0 0.0
        %1804 = vmatpush1.msra.mxu0 0.0
        %1805 = vmatprep.subr.mxu0 0.0
        %1806 = vmatpush1.msra.mxu0 0.0
        %1807 = vmatprep.subr.mxu0 0.0
        %1808 = vmatpush1.msra.mxu0 0.0
        %1809 = vmatprep.subr.mxu0 0.0
        %1810 = vmatpush1.msra.mxu0 0.0
        %1811 = vmatprep.subr.mxu0 0.0
        %1812 = vmatpush1.msra.mxu0 0.0
        %1813 = vmatprep.subr.mxu0 0.0
        %1814 = vmatpush1.msra.mxu0 0.0
        %1815 = vmatprep.subr.mxu0 0.0
        %1816 = vmatpush1.msra.mxu0 %v1281
        %1817 = vmatprep.subr.mxu0 0.0
        %1818 = vmatpush2.msra.mxu0 0.0
        %1819 = vmatprep.subr.mxu0 0.0
        %1820 = vmatpush2.msra.mxu0 0.0
        %1821 = vmatprep.subr.mxu0 0.0
        %1822 = vmatpush2.msra.mxu0 0.0
        %1823 = vmatprep.subr.mxu0 0.0
        %1824 = vmatpush2.msra.mxu0 0.0
        %1825 = vmatprep.subr.mxu0 0.0
        %1826 = vmatpush2.msra.mxu0 0.0
        %1827 = vmatprep.subr.mxu0 0.0
        %1828 = vmatpush2.msra.mxu0 0.0
        %1829 = vmatprep.subr.mxu0 0.0
        %1830 = vmatpush2.msra.mxu0 0.0
        %1831 = vmatprep.subr.mxu0 0.0
        %1832 = vmatpush2.msra.mxu0 0.0
        %1833 = vmatprep.subr.mxu0 0.0
        %1834 = vmatpush2.msra.mxu0 0.0
        %1835 = vmatprep.subr.mxu0 0.0
        %1836 = vmatpush2.msra.mxu0 0.0
        %1837 = vmatprep.subr.mxu0 0.0
        %1838 = vmatpush2.msra.mxu0 0.0
        %1839 = vmatprep.subr.mxu0 0.0
        %1840 = vmatpush2.msra.mxu0 0.0
        %1841 = vmatprep.subr.mxu0 0.0
        %1842 = vmatpush2.msra.mxu0 0.0
        %1843 = vmatprep.subr.mxu0 0.0
        %1844 = vmatpush2.msra.mxu0 0.0
        %1845 = vmatprep.subr.mxu0 0.0
        %1846 = vmatpush2.msra.mxu0 0.0
        %1847 = vmatprep.subr.mxu0 0.0
        %1848 = vmatpush2.msra.mxu0 0.0
        %1849 = vmatprep.mubr.f32.mxu0 0.0
        %1850 = vmatmul.mubr.f32.gmra.mxu0 %v1783
        %v1851 = vpop.f32.mrf.mxu0
        %v1852 = vadd.f32 0.0, %v1851
        %v1853 = vpop.f32.mrf.mxu0
        %1854 = vdwg.mxu0
        %v1856 = vsel %vm1283, %v1631, 0
        %1858 = vmatprep.subr.mxu0 0.0
        %1859 = vmatpush1.msra.mxu0 0.0
        %1860 = vmatprep.subr.mxu0 0.0
        %1861 = vmatpush1.msra.mxu0 0.0
        %1862 = vmatprep.subr.mxu0 0.0
        %1863 = vmatpush1.msra.mxu0 0.0
        %1864 = vmatprep.subr.mxu0 0.0
        %1865 = vmatpush1.msra.mxu0 0.0
        %1866 = vmatprep.subr.mxu0 0.0
        %1867 = vmatpush1.msra.mxu0 0.0
        %1868 = vmatprep.subr.mxu0 0.0
        %1869 = vmatpush1.msra.mxu0 0.0
        %1870 = vmatprep.subr.mxu0 0.0
        %1871 = vmatpush1.msra.mxu0 0.0
        %1872 = vmatprep.subr.mxu0 0.0
        %1873 = vmatpush1.msra.mxu0 0.0
        %1874 = vmatprep.subr.mxu0 0.0
        %1875 = vmatpush1.msra.mxu0 0.0
        %1876 = vmatprep.subr.mxu0 0.0
        %1877 = vmatpush1.msra.mxu0 0.0
        %1878 = vmatprep.subr.mxu0 0.0
        %1879 = vmatpush1.msra.mxu0 0.0
        %1880 = vmatprep.subr.mxu0 0.0
        %1881 = vmatpush1.msra.mxu0 0.0
        %1882 = vmatprep.subr.mxu0 0.0
        %1883 = vmatpush1.msra.mxu0 0.0
        %1884 = vmatprep.subr.mxu0 0.0
        %1885 = vmatpush1.msra.mxu0 0.0
        %1886 = vmatprep.subr.mxu0 0.0
        %1887 = vmatpush1.msra.mxu0 0.0
        %1888 = vmatprep.subr.mxu0 0.0
        %1889 = vmatpush1.msra.mxu0 %v1282
        %1890 = vmatprep.subr.mxu0 0.0
        %1891 = vmatpush2.msra.mxu0 0.0
        %1892 = vmatprep.subr.mxu0 0.0
        %1893 = vmatpush2.msra.mxu0 0.0
        %1894 = vmatprep.subr.mxu0 0.0
        %1895 = vmatpush2.msra.mxu0 0.0
        %1896 = vmatprep.subr.mxu0 0.0
        %1897 = vmatpush2.msra.mxu0 0.0
        %1898 = vmatprep.subr.mxu0 0.0
        %1899 = vmatpush2.msra.mxu0 0.0
        %1900 = vmatprep.subr.mxu0 0.0
        %1901 = vmatpush2.msra.mxu0 0.0
        %1902 = vmatprep.subr.mxu0 0.0
        %1903 = vmatpush2.msra.mxu0 0.0
        %1904 = vmatprep.subr.mxu0 0.0
        %1905 = vmatpush2.msra.mxu0 0.0
        %1906 = vmatprep.subr.mxu0 0.0
        %1907 = vmatpush2.msra.mxu0 0.0
        %1908 = vmatprep.subr.mxu0 0.0
        %1909 = vmatpush2.msra.mxu0 0.0
        %1910 = vmatprep.subr.mxu0 0.0
        %1911 = vmatpush2.msra.mxu0 0.0
        %1912 = vmatprep.subr.mxu0 0.0
        %1913 = vmatpush2.msra.mxu0 0.0
        %1914 = vmatprep.subr.mxu0 0.0
        %1915 = vmatpush2.msra.mxu0 0.0
        %1916 = vmatprep.subr.mxu0 0.0
        %1917 = vmatpush2.msra.mxu0 0.0
        %1918 = vmatprep.subr.mxu0 0.0
        %1919 = vmatpush2.msra.mxu0 0.0
        %1920 = vmatprep.subr.mxu0 0.0
        %1921 = vmatpush2.msra.mxu0 0.0
        %1922 = vmatprep.mubr.f32.mxu0 0.0
        %1923 = vmatmul.mubr.f32.gmra.mxu0 %v1856
        %v1924 = vpop.f32.mrf.mxu0
        %v1925 = vadd.f32 0.0, %v1924
        %v1926 = vpop.f32.mrf.mxu0
        %1927 = vdwg.mxu0
        %v1928 = vcombine.low %v1706, %v1852
        %v1929 = vcombine.high %v1706, %v1852
        %v1931 = vunpack.c.l.s4 1983009808
        %v1932 = vunpack.c.0.s8 %v1931
        %v1933 = vlaneseq
        %v1934 = vshrl.u32 %v1933, 7
        %v1935 = vsub.s32 %v1932, %v1934
        %v1936 = vrot.slane %v1928, %v1935
        %v1938 = vunpack.c.l.s4 1983009808
        %v1939 = vunpack.c.0.s8 %v1938
        %v1940 = vlaneseq
        %v1941 = vshrl.u32 %v1940, 7
        %v1942 = vsub.s32 %v1939, %v1941
        %v1943 = vrot.slane %v1929, %v1942
        %v1944 = vcombine.low %v1779, %v1925
        %v1945 = vcombine.high %v1779, %v1925
        %v1947 = vunpack.c.l.s4 1983009808
        %v1948 = vunpack.c.0.s8 %v1947
        %v1949 = vlaneseq
        %v1950 = vshrl.u32 %v1949, 7
        %v1951 = vsub.s32 %v1948, %v1950
        %v1952 = vrot.slane %v1944, %v1951
        %v1954 = vunpack.c.l.s4 1983009808
        %v1955 = vunpack.c.0.s8 %v1954
        %v1956 = vlaneseq
        %v1957 = vshrl.u32 %v1956, 7
        %v1958 = vsub.s32 %v1955, %v1957
        %v1959 = vrot.slane %v1945, %v1958
        %v1960 = vcombine.low %v1936, %v1952
        %v1961 = vcombine.high %v1936, %v1952
        %v1963 = vunpack.c.l.s4 1934713408
        %v1964 = vunpack.c.0.s8 %v1963
        %v1965 = vlaneseq
        %v1966 = vshrl.u32 %v1965, 7
        %v1967 = vsub.s32 %v1964, %v1966
        %v1968 = vrot.slane %v1960, %v1967
        %v1970 = vunpack.c.l.s4 1934713408
        %v1971 = vunpack.c.0.s8 %v1970
        %v1972 = vlaneseq
        %v1973 = vshrl.u32 %v1972, 7
        %v1974 = vsub.s32 %v1971, %v1973
        %v1975 = vrot.slane %v1961, %v1974
        %v1976 = vcombine.low %v1943, %v1959
        %v1977 = vcombine.high %v1943, %v1959
        %v1979 = vunpack.c.l.s4 1934713408
        %v1980 = vunpack.c.0.s8 %v1979
        %v1981 = vlaneseq
        %v1982 = vshrl.u32 %v1981, 7
        %v1983 = vsub.s32 %v1980, %v1982
        %v1984 = vrot.slane %v1976, %v1983
        %v1986 = vunpack.c.l.s4 1934713408
        %v1987 = vunpack.c.0.s8 %v1986
        %v1988 = vlaneseq
        %v1989 = vshrl.u32 %v1988, 7
        %v1990 = vsub.s32 %v1987, %v1989
        %v1991 = vrot.slane %v1977, %v1990
        %v1992 = vcombine.high %v1968, 0.0
        %v1993 = vcombine.high %v1975, 0.0
        %v1994 = vcombine.high %v1984, 0.0
        %v1995 = vcombine.high %v1991, 0.0
        %v1996 = vcombine.low %v1968, %v1975
        %v1998 = vunpack.c.l.s4 1983009808
        %v1999 = vunpack.c.0.s8 %v1998
        %v2000 = vlaneseq
        %v2001 = vshrl.u32 %v2000, 7
        %v2002 = vsub.s32 %v1999, %v2001
        %v2003 = vrot.slane %v1996, %v2002
        %v2004 = vcombine.low %v1992, %v1993
        %v2006 = vunpack.c.l.s4 1983009808
        %v2007 = vunpack.c.0.s8 %v2006
        %v2008 = vlaneseq
        %v2009 = vshrl.u32 %v2008, 7
        %v2010 = vsub.s32 %v2007, %v2009
        %v2011 = vrot.slane %v2004, %v2010
        %v2012 = vcombine.low %v1984, %v1991
        %v2014 = vunpack.c.l.s4 1983009808
        %v2015 = vunpack.c.0.s8 %v2014
        %v2016 = vlaneseq
        %v2017 = vshrl.u32 %v2016, 7
        %v2018 = vsub.s32 %v2015, %v2017
        %v2019 = vrot.slane %v2012, %v2018
        %v2020 = vcombine.low %v1994, %v1995
        %v2022 = vunpack.c.l.s4 1983009808
        %v2023 = vunpack.c.0.s8 %v2022
        %v2024 = vlaneseq
        %v2025 = vshrl.u32 %v2024, 7
        %v2026 = vsub.s32 %v2023, %v2025
        %v2027 = vrot.slane %v2020, %v2026
        %v2028 = vcombine.low %v2003, %v2011
        %v2029 = vcombine.high %v2003, %v2011
        %v2031 = vunpack.c.l.s4 1934713408
        %v2032 = vunpack.c.0.s8 %v2031
        %v2033 = vlaneseq
        %v2034 = vshrl.u32 %v2033, 7
        %v2035 = vsub.s32 %v2032, %v2034
        %v2036 = vrot.slane %v2028, %v2035
        %v2038 = vunpack.c.l.s4 1934713408
        %v2039 = vunpack.c.0.s8 %v2038
        %v2040 = vlaneseq
        %v2041 = vshrl.u32 %v2040, 7
        %v2042 = vsub.s32 %v2039, %v2041
        %v2043 = vrot.slane %v2029, %v2042
        %v2044 = vcombine.low %v2019, %v2027
        %v2045 = vcombine.high %v2019, %v2027
        %v2047 = vunpack.c.l.s4 1934713408
        %v2048 = vunpack.c.0.s8 %v2047
        %v2049 = vlaneseq
        %v2050 = vshrl.u32 %v2049, 7
        %v2051 = vsub.s32 %v2048, %v2050
        %v2052 = vrot.slane %v2044, %v2051
        %v2054 = vunpack.c.l.s4 1934713408
        %v2055 = vunpack.c.0.s8 %v2054
        %v2056 = vlaneseq
        %v2057 = vshrl.u32 %v2056, 7
        %v2058 = vsub.s32 %v2055, %v2057
        %v2059 = vrot.slane %v2045, %v2058
        %v2060 = vcombine.low %v2036, %v2052
        %v2061 = vcombine.high %v2036, %v2052
        %v2062 = vcombine.low %v2043, %v2059
        %v2063 = vcombine.high %v2043, %v2059
        %2065 = vrot.lane.b32.xlu0 %v2061, 8
        %v2066 = vpop.permute.xlu0 %2065
        %2069 = vrot.lane.b32.xlu0 %v2062, 16
        %v2070 = vpop.permute.xlu0 %2069
        %2073 = vrot.lane.b32.xlu0 %v2063, 24
        %v2074 = vpop.permute.xlu0 %2073
        %v2076 = vsel %vm1283, %v2060, %v2066
        %vm2077 = vcmask 130048
        %v2078 = vsel %vm2077, %v2076, %v2070
        %vm2079 = vcmask 195584
        %v2080 = vsel %vm2079, %v2078, %v2074
        %v2081 = vld [vmem:[#allocation13] sm:$0xff]
        %v2082 = vld [vmem:[#allocation13 + $0x8] sm:$0xff]
        %v2083 = vld [vmem:[#allocation13 + $0x10] sm:$0xff]
        %v2084 = vld [vmem:[#allocation13 + $0x18] sm:$0xff]
        %v2085 = vld [vmem:[%s10] sm:$0x1]
        %v2087 = vlaneseq
        %v2088 = vshrl.u32 %v2087, 7
        %v2089 = vsub.s32 0, %v2088
        %v2090 = vrot.slane %v2085, %v2089
        %v2093 = vsel %vm602, %v2080, 0
        %2095 = vmatprep.subr.mxu0 0.0
        %2096 = vmatpush1.msra.mxu0 0.0
        %2097 = vmatprep.subr.mxu0 0.0
        %2098 = vmatpush1.msra.mxu0 0.0
        %2099 = vmatprep.subr.mxu0 0.0
        %2100 = vmatpush1.msra.mxu0 0.0
        %2101 = vmatprep.subr.mxu0 0.0
        %2102 = vmatpush1.msra.mxu0 0.0
        %2103 = vmatprep.subr.mxu0 0.0
        %2104 = vmatpush1.msra.mxu0 0.0
        %2105 = vmatprep.subr.mxu0 0.0
        %2106 = vmatpush1.msra.mxu0 0.0
        %2107 = vmatprep.subr.mxu0 0.0
        %2108 = vmatpush1.msra.mxu0 0.0
        %2109 = vmatprep.subr.mxu0 0.0
        %2110 = vmatpush1.msra.mxu0 0.0
        %2111 = vmatprep.subr.mxu0 0.0
        %2112 = vmatpush1.msra.mxu0 0.0
        %2113 = vmatprep.subr.mxu0 0.0
        %2114 = vmatpush1.msra.mxu0 0.0
        %2115 = vmatprep.subr.mxu0 0.0
        %2116 = vmatpush1.msra.mxu0 0.0
        %2117 = vmatprep.subr.mxu0 0.0
        %2118 = vmatpush1.msra.mxu0 0.0
        %2119 = vmatprep.subr.mxu0 0.0
        %2120 = vmatpush1.msra.mxu0 %v2084
        %2121 = vmatprep.subr.mxu0 0.0
        %2122 = vmatpush1.msra.mxu0 %v2083
        %2123 = vmatprep.subr.mxu0 0.0
        %2124 = vmatpush1.msra.mxu0 %v2082
        %2125 = vmatprep.subr.mxu0 0.0
        %2126 = vmatpush1.msra.mxu0 %v2081
        %2127 = vmatprep.subr.mxu0 0.0
        %2128 = vmatpush2.msra.mxu0 0.0
        %2129 = vmatprep.subr.mxu0 0.0
        %2130 = vmatpush2.msra.mxu0 0.0
        %2131 = vmatprep.subr.mxu0 0.0
        %2132 = vmatpush2.msra.mxu0 0.0
        %2133 = vmatprep.subr.mxu0 0.0
        %2134 = vmatpush2.msra.mxu0 0.0
        %2135 = vmatprep.subr.mxu0 0.0
        %2136 = vmatpush2.msra.mxu0 0.0
        %2137 = vmatprep.subr.mxu0 0.0
        %2138 = vmatpush2.msra.mxu0 0.0
        %2139 = vmatprep.subr.mxu0 0.0
        %2140 = vmatpush2.msra.mxu0 0.0
        %2141 = vmatprep.subr.mxu0 0.0
        %2142 = vmatpush2.msra.mxu0 0.0
        %2143 = vmatprep.subr.mxu0 0.0
        %2144 = vmatpush2.msra.mxu0 0.0
        %2145 = vmatprep.subr.mxu0 0.0
        %2146 = vmatpush2.msra.mxu0 0.0
        %2147 = vmatprep.subr.mxu0 0.0
        %2148 = vmatpush2.msra.mxu0 0.0
        %2149 = vmatprep.subr.mxu0 0.0
        %2150 = vmatpush2.msra.mxu0 0.0
        %2151 = vmatprep.subr.mxu0 0.0
        %2152 = vmatpush2.msra.mxu0 0.0
        %2153 = vmatprep.subr.mxu0 0.0
        %2154 = vmatpush2.msra.mxu0 0.0
        %2155 = vmatprep.subr.mxu0 0.0
        %2156 = vmatpush2.msra.mxu0 0.0
        %2157 = vmatprep.subr.mxu0 0.0
        %2158 = vmatpush2.msra.mxu0 0.0
        %2159 = vmatprep.mubr.f32.mxu0 0.0
        %2160 = vmatmul.mubr.f32.gmra.mxu0 %v2093
        %v2161 = vpop.f32.mrf.mxu0
        %v2162 = vadd.f32 %v2090, %v2161
        %v2163 = vpop.f32.mrf.mxu0
        %2164 = vdwg.mxu0
        %2165 = vst.msk [vmem:[%s580] sm:$0xff] %vm602, %v2162
        %s2166 = sand.u32 %s308, 1
        %s2167 = scalar_lea.sflag [#allocation4], %s2166
        %s2168 = sand.u32 %s308, 1
        %s2169 = smul.addr %s2168, 8
        %s2170 = scalar_lea.vmem [#allocation14], %s2169
        %s2171 = sand.u32 %s336, 1
        %s2172 = scalar_lea.sflag [#allocation16], %s2171
        %s2173 = sand.u32 %s336, 1
        %s2174 = smul.addr %s2173, 32
        %s2175 = scalar_lea.vmem [#allocation15], %s2174
        // Predicated region
        $region93: #{tpu_custom_call.1} parent=63 // pred_check
          %p2176 = pneg %p318
        $region94: #{tpu_custom_call.1} parent=63 // pred_check_branch
          %2178 = sbr.rel (%p2176) target = $region96
        $region95: #{tpu_custom_call.1} parent=63 // pred_region
          %s2180 = ssub.s32 128, 128
          %2181 = vsyncadd %s2167, %s2180
          %s2182 = sadd.s32 %s43, %s42
          %s2183 = smul.addr %s2182, 128
          %s2184 = scalar_lea.hbm %s11, %s2183
          %s2186 = sshll.u32 %s2170, 4
          %s2187 = int_to_ptr.vmem [resolvable:$true] %s2186
          %2189 = dma.vmem_to_hbm [thread:$0]  %s2187, 128, %s2184, %s2167
        $region96: #{tpu_custom_call.1} parent=63 // pred_fallthru
          _
        // Predicated region
        $region97: #{tpu_custom_call.1} parent=63 // pred_check
          %p2190 = pneg %p346
        $region98: #{tpu_custom_call.1} parent=63 // pred_check_branch
          %2192 = sbr.rel (%p2190) target = $region100
        $region99: #{tpu_custom_call.1} parent=63 // pred_region
          %s2194 = ssub.s32 512, 512
          %2195 = vsyncadd %s2172, %s2194
          %s2196 = smul.addr %s42, 4
          %s2197 = sadd.s32 %s43, %s2196
          %s2198 = smul.addr %s2197, 128
          %s2199 = scalar_lea.hbm %s12, %s2198
          %s2200 = sshll.u32 %s2175, 4
          %s2201 = int_to_ptr.vmem [resolvable:$true] %s2200
          %2206 = dma.vmem_to_hbm [thread:$0]  %s2201, 512, %s2199, %s2172, 128, 128, 8
        $region100: #{tpu_custom_call.1} parent=63 // pred_fallthru
          _
      $region64: #{tpu_custom_call.1} parent=5 // pred_fallthru
        _
      %p2207 = scmp.le.s32.totalorder 2, %s33
      // Predicated region
      $region101: #{tpu_custom_call.1} parent=5 // pred_check
        %p2208 = pneg %p2207
      $region102: #{tpu_custom_call.1} parent=5 // pred_check_branch
        %2210 = sbr.rel (%p2208) target = $region104
      $region103: #{tpu_custom_call.1} parent=5 // pred_region
        %s2211 = ssub.s32 %s33, 2
        // Predicated region
        $region105: #{tpu_custom_call.1} parent=103 // pred_check
          %p2212 = pneg %p324
        $region106: #{tpu_custom_call.1} parent=103 // pred_check_branch
          %2214 = sbr.rel (%p2212) target = $region108
        $region107: #{tpu_custom_call.1} parent=103 // pred_region
          %s2215 = sand.u32 %s309, 1
          %s2216 = scalar_lea.sflag [#allocation4], %s2215
          %s2217 = sand.u32 %s309, 1
          %s2218 = smul.addr %s2217, 8
          %s2219 = scalar_lea.vmem [#allocation14], %s2218
          %2220 = dma.done %s2216, 128
        $region108: #{tpu_custom_call.1} parent=103 // pred_fallthru
          _
        // Predicated region
        $region109: #{tpu_custom_call.1} parent=103 // pred_check
          %p2221 = pneg %p352
        $region110: #{tpu_custom_call.1} parent=103 // pred_check_branch
          %2223 = sbr.rel (%p2221) target = $region112
        $region111: #{tpu_custom_call.1} parent=103 // pred_region
          %s2224 = sand.u32 %s337, 1
          %s2225 = scalar_lea.sflag [#allocation16], %s2224
          %s2226 = sand.u32 %s337, 1
          %s2227 = smul.addr %s2226, 32
          %s2228 = scalar_lea.vmem [#allocation15], %s2227
          %2229 = dma.done %s2225, 512
        $region112: #{tpu_custom_call.1} parent=103 // pred_fallthru
          _
      $region104: #{tpu_custom_call.1} parent=5 // pred_fallthru
        _
    $region6: #{tpu_custom_call.1} parent=1 // loop_footer
      %s37 = sadd.s32 1, %s33
    $region7: #{tpu_custom_call.1} parent=1 // loop_footer_branch
      %32 = sbr.rel target = $region3
    $region8: #{tpu_custom_call.1} parent=1 // loop_exit
      _
    %2230 = vsyncpa [#allocation3], 1
    %s2231 = scalar_lea.sflag [#allocation3], 1
    %2232 = vsyncpa %s2231, 1
    %2233 = vsyncpa [#allocation6], 1
    %s2234 = scalar_lea.sflag [#allocation6], 1
    %2235 = vsyncpa %s2234, 1
    %2236 = vsyncpa [#allocation9], 1
    %2237 = vsyncpa [#allocation12], 1
    %2238 = vsyncpa [#allocation4], 1
    %s2239 = scalar_lea.sflag [#allocation4], 1
    %2240 = vsyncpa %s2239, 1
    %2241 = vsyncpa [#allocation16], 1
    %s2242 = scalar_lea.sflag [#allocation16], 1
    %2243 = vsyncpa %s2242, 1

</llo_original>
